<compile_context>
chip_gen: v5e
topology: v5e:2x2
jax: 0.10.0
libtpu: 0.0.40
codegen_flags: <defaults>
</compile_context>

<pallas_src>
import functools

import jax
import jax.numpy as jnp
from jax import lax
from jax.experimental import pallas as pl
from jax.experimental.pallas import tpu as pltpu

EPS = 1e-5  # nn.InstanceNorm2d default eps


def resnet_block_kernel(col_ref, xpad_ref, x_ref, w1_ref, w2_ref, o_ref,
                        *, C, C_pad, H, W):
    """Full ResnetBlock forward for one batch element.

    col_ref : (1, L)           int32 column-within-padded-row map (precomputed)
    xpad_ref: (1, C_pad, P*Q)  reflection-padded input, matmul dtype
    x_ref   : (1, C, H*W)      original input (residual path), f32
    w*_ref  : (C_pad, 9*C_pad) flattened per-tap conv weights, matmul dtype
    o_ref   : (1, C, H*W)      output block
    """
    HW = H * W
    Q = W + 2                      # padded width
    L = H * Q - 2                  # Q-strided conv-output width
    cdtype = w1_ref.dtype          # matmul operand dtype (bf16 or f32)
    inv_hw = 1.0 / HW

    col = col_ref[...]             # (1, L)
    valid = col < W                # real output columns (wrap cols masked out)
    wrap_r = col == W              # slot for right-reflected col of row h
    wrap_l = col == W + 1          # slot for left-reflected col of row h+1

    def conv3x3(xp, w_ref):
        # One MXU matmul, contraction depth 9*C_pad: stack the nine tap-shifted
        # lane views of the padded image along the sublane (contraction) axis.
        xs = jnp.concatenate(
            [xp[:, dy * Q + dx:dy * Q + dx + L]
             for dy in range(3) for dx in range(3)], axis=0)        # (9*C_pad, L)
        return jnp.dot(w_ref[...], xs,
                       preferred_element_type=jnp.float32)          # (C_pad, L) f32

    def instance_norm(t):
        # Per-channel stats over the H*W valid columns (fused sum / sum-sq pass).
        tm = jnp.where(valid, t, 0.0)
        s = jnp.sum(tm, axis=1, keepdims=True)
        ss = jnp.sum(tm * tm, axis=1, keepdims=True)
        mu = s * inv_hw
        var = jnp.maximum(ss * inv_hw - mu * mu, 0.0)  # clamp one-pass variance
        return (t - mu) * lax.rsqrt(var + EPS)

    def repad(t):
        # Rebuild the (C_pad, P*Q) reflection-padded image directly from the
        # Q-strided output `t`: two lane rolls + two selects fill the wrap
        # columns with the right/left reflected values, then two small concats
        # add the border rows/columns.  No per-row unpad/repad concat chains.
        r_src = jnp.roll(t, 2, axis=1)    # value from p-2 -> right reflect of row h
        l_src = jnp.roll(t, -2, axis=1)   # value from p+2 -> left reflect of row h+1
        fixed = jnp.where(wrap_r, r_src, jnp.where(wrap_l, l_src, t))
        interior = jnp.concatenate(
            [t[:, 1:2], fixed, t[:, L - 2:L - 1]], axis=1)          # padded rows 1..H
        return jnp.concatenate(
            [interior[:, Q:2 * Q],                                  # top row (reflect)
             interior,
             interior[:, (H - 2) * Q:(H - 1) * Q]], axis=1)         # bottom row (reflect)

    # conv1 -> instance norm -> ReLU.  (Conv bias omitted: a per-channel constant
    # is exactly cancelled by the affine-free InstanceNorm2d that follows.)
    y = conv3x3(xpad_ref[0], w1_ref)
    y = jnp.maximum(instance_norm(y), 0.0)
    # reflection pad (in Q-strided layout) -> conv2 -> instance norm.
    y = conv3x3(repad(y).astype(cdtype), w2_ref)
    y = instance_norm(y)
    # Compact (C, H*W) lane-dense layout only for the residual add + full-lane store.
    y_c = jnp.concatenate([y[:C, h * Q:h * Q + W] for h in range(H)], axis=1)
    o_ref[0] = (x_ref[0].astype(jnp.float32) + y_c).astype(o_ref.dtype)


def resnet_block_pallas(x_nchw, w1, b1, w2, b2, *, use_bf16_matmul=True):
    """x_nchw: (N, C, H, W); w*: (C, C, 3, 3) OIHW; b*: (C,) (folded out, see below)."""
    # The per-channel conv biases are mathematically cancelled by the
    # affine-free InstanceNorm2d that follows each conv, so they are dropped.
    del b1, b2

    N, C, H, W = x_nchw.shape
    HW, P, Q = H * W, H + 2, W + 2
    PQ, L = P * Q, H * Q - 2
    # Pad channels to a multiple of 16 so the in-kernel sublane concats and
    # matmul operands are tile-aligned for both f32 (8) and bf16 (16) layouts.
    C_pad = ((C + 15) // 16) * 16
    cdtype = jnp.bfloat16 if use_bf16_matmul else jnp.float32

    x_f32 = x_nchw.astype(jnp.float32)
    # First reflection pad done by XLA in HBM; kernel receives (C_pad, P*Q).
    xpad = jnp.pad(x_f32, ((0, 0), (0, 0), (1, 1), (1, 1)), mode="reflect")
    xpad = jnp.pad(xpad, ((0, 0), (0, C_pad - C), (0, 0), (0, 0)))
    xpad = xpad.reshape(N, C_pad, PQ).astype(cdtype)

    x2 = x_nchw.reshape(N, C, HW)                      # residual / output layout

    def flatten_weight(w):
        wt = jnp.transpose(w, (0, 2, 3, 1))            # (C_out, 3, 3, C_in)
        wt = jnp.pad(wt, ((0, C_pad - C), (0, 0), (0, 0), (0, C_pad - C)))
        return wt.reshape(C_pad, 9 * C_pad).astype(cdtype)

    w1_f = flatten_weight(w1)
    w2_f = flatten_weight(w2)
    col = (jnp.arange(L, dtype=jnp.int32) % Q).reshape(1, L)

    kern = functools.partial(resnet_block_kernel, C=C, C_pad=C_pad, H=H, W=W)

    esize = jnp.dtype(cdtype).itemsize
    flops = int(N * 2 * 2 * C_pad * (9 * C_pad) * L)   # two convs
    bytes_accessed = int(4 * (2 * N * C * HW)
                         + esize * (N * C_pad * PQ + 2 * C_pad * 9 * C_pad)
                         + 4 * L)
    cost = pl.CostEstimate(flops=flops, transcendentals=int(2 * N * C_pad),
                           bytes_accessed=bytes_accessed)

    out = pl.pallas_call(
        kern,
        out_shape=jax.ShapeDtypeStruct((N, C, HW), x_nchw.dtype),
        grid=(N,),
        in_specs=[
            pl.BlockSpec((1, L), lambda n: (0, 0)),               # col-in-row map
            pl.BlockSpec((1, C_pad, PQ), lambda n: (n, 0, 0)),    # padded input
            pl.BlockSpec((1, C, HW), lambda n: (n, 0, 0)),        # residual input
            pl.BlockSpec((C_pad, 9 * C_pad), lambda n: (0, 0)),   # conv1 weights
            pl.BlockSpec((C_pad, 9 * C_pad), lambda n: (0, 0)),   # conv2 weights
        ],
        out_specs=pl.BlockSpec((1, C, HW), lambda n: (n, 0, 0)),
        compiler_params=pltpu.CompilerParams(
            dimension_semantics=("parallel",),
            # 64 MiB is comfortable on v5e/v6e (128 MiB physical).  On v7x
            # (64 MiB physical) at CycleGAN-production sizes drop this to
            # <=48 MiB, single-buffer the constant-index weight specs
            # (pipeline_mode=pl.Buffered(1)) and/or add a C_out tile axis.
            vmem_limit_bytes=64 * 1024 * 1024),
        cost_estimate=cost,
    )(col, xpad, x2, w1_f, w2_f)
    return out.reshape(N, C, H, W)


def resnet_block_reference(x, w1, b1, w2, b2):
    """Pure-JAX reference matching the PyTorch module semantics (full f32)."""
    def pad_reflect(t):
        return jnp.pad(t, ((0, 0), (0, 0), (1, 1), (1, 1)), mode="reflect")

    def conv(t, w, b):
        y = lax.conv_general_dilated(
            pad_reflect(t), w, window_strides=(1, 1), padding="VALID",
            dimension_numbers=("NCHW", "OIHW", "NCHW"),
            precision=lax.Precision.HIGHEST)
        return y + b.reshape(1, -1, 1, 1)

    def inorm(t):
        mu = jnp.mean(t, axis=(2, 3), keepdims=True)
        var = jnp.mean((t - mu) ** 2, axis=(2, 3), keepdims=True)
        return (t - mu) / jnp.sqrt(var + EPS)

    y = jax.nn.relu(inorm(conv(x, w1, b1)))
    y = inorm(conv(y, w2, b2))
    return x + y


if __name__ == "__main__":
    # Small shapes consistent with the module: ResnetBlock(dim=4) on NCHW input.
    N, C, H, W = 2, 4, 16, 16
    key = jax.random.PRNGKey(0)
    kx, kw1, kw2 = jax.random.split(key, 3)

    x = jax.random.normal(kx, (N, C, H, W), dtype=jnp.float32)

    # kaiming_normal_ (fan_in mode, gain=sqrt(2)); conv biases are zero-filled
    # per pad_conv_norm_relu.
    fan_in = C * 3 * 3
    std = (2.0 / fan_in) ** 0.5
    w1 = std * jax.random.normal(kw1, (C, C, 3, 3), dtype=jnp.float32)
    w2 = std * jax.random.normal(kw2, (C, C, 3, 3), dtype=jnp.float32)
    b1 = jnp.zeros((C,), dtype=jnp.float32)
    b2 = jnp.zeros((C,), dtype=jnp.float32)

    ref = jax.block_until_ready(resnet_block_reference(x, w1, b1, w2, b2))

    # Structural correctness gate: f32 matmul operands.  Tolerance accommodates
    # the MXU's reduced-precision f32 passes; structural (padding / indexing /
    # norm) errors would be orders of magnitude larger.
    out_f32 = jax.block_until_ready(
        resnet_block_pallas(x, w1, b1, w2, b2, use_bf16_matmul=False))
    assert out_f32.shape == (N, C, H, W)
    err_f32 = float(jnp.max(jnp.abs(out_f32 - ref)))
    assert jnp.allclose(out_f32, ref, rtol=1e-2, atol=1e-2), \
        f"f32 max abs err = {err_f32}"

    # Performance configuration: bf16 MXU operands, f32 accumulation/statistics.
    out_bf16 = jax.block_until_ready(
        resnet_block_pallas(x, w1, b1, w2, b2, use_bf16_matmul=True))
    err_bf16 = float(jnp.max(jnp.abs(out_bf16 - ref)))
    assert jnp.allclose(out_bf16, ref, rtol=5e-2, atol=5e-2), \
        f"bf16 max abs err = {err_bf16}"

    print("KERNEL_OK")
</pallas_src>

<mosaic_0001>
module attributes {stable_mosaic.version = 11 : i64} {
  func.func @resnet_block_kernel(%arg0: i32, %arg1: memref<1x286xi32, #tpu.memory_space<vmem>>, %arg2: memref<1x16x324xf32, #tpu.memory_space<vmem>>, %arg3: memref<1x4x256xf32, #tpu.memory_space<vmem>>, %arg4: memref<16x144xf32, #tpu.memory_space<vmem>>, %arg5: memref<16x144xf32, #tpu.memory_space<vmem>>, %arg6: memref<1x4x256xf32, #tpu.memory_space<vmem>>) attributes {dimension_semantics = [#tpu.dimension_semantics<parallel>], iteration_bounds = array<i64: 2>, scalar_prefetch = 0 : i64, scratch_operands = 0 : i64, tpu.core_type = #tpu.core_type<tc>, window_params = [{pipeline_mode = #tpu.pipeline_mode<synchronous>, transform_indices = @transform_0, window_bounds = array<i64: 1, 286>}, {transform_indices = @transform_1, window_bounds = array<i64: 1, 16, 324>}, {transform_indices = @transform_2, window_bounds = array<i64: 1, 4, 256>}, {pipeline_mode = #tpu.pipeline_mode<synchronous>, transform_indices = @transform_3, window_bounds = array<i64: 16, 144>}, {pipeline_mode = #tpu.pipeline_mode<synchronous>, transform_indices = @transform_4, window_bounds = array<i64: 16, 144>}, {transform_indices = @transform_5, window_bounds = array<i64: 1, 4, 256>}]} {
    %c0 = arith.constant 0 : index
    %c0_0 = arith.constant 0 : index
    %0 = vector.load %arg1[%c0, %c0_0] : memref<1x286xi32, #tpu.memory_space<vmem>>, vector<1x286xi32>
    %c16_i32 = arith.constant 16 : i32
    %1 = vector.broadcast %c16_i32 : i32 to vector<1x286xi32>
    %2 = arith.cmpi slt, %0, %1 : vector<1x286xi32>
    %c16_i32_1 = arith.constant 16 : i32
    %3 = vector.broadcast %c16_i32_1 : i32 to vector<1x286xi32>
    %4 = arith.cmpi eq, %0, %3 : vector<1x286xi32>
    %c17_i32 = arith.constant 17 : i32
    %5 = vector.broadcast %c17_i32 : i32 to vector<1x286xi32>
    %6 = arith.cmpi eq, %0, %5 : vector<1x286xi32>
    %c0_2 = arith.constant 0 : index
    %c0_3 = arith.constant 0 : index
    %c0_4 = arith.constant 0 : index
    %7 = vector.load %arg2[%c0_2, %c0_3, %c0_4] : memref<1x16x324xf32, #tpu.memory_space<vmem>>, vector<1x16x324xf32>
    %8 = vector.shape_cast %7 : vector<1x16x324xf32> to vector<16x324xf32>
    %9 = vector.extract_strided_slice %8 {offsets = [0, 0], sizes = [16, 286], strides = [1, 1]} : vector<16x324xf32> to vector<16x286xf32>
    %10 = vector.extract_strided_slice %8 {offsets = [0, 1], sizes = [16, 286], strides = [1, 1]} : vector<16x324xf32> to vector<16x286xf32>
    %11 = vector.extract_strided_slice %8 {offsets = [0, 2], sizes = [16, 286], strides = [1, 1]} : vector<16x324xf32> to vector<16x286xf32>
    %12 = vector.extract_strided_slice %8 {offsets = [0, 18], sizes = [16, 286], strides = [1, 1]} : vector<16x324xf32> to vector<16x286xf32>
    %13 = vector.extract_strided_slice %8 {offsets = [0, 19], sizes = [16, 286], strides = [1, 1]} : vector<16x324xf32> to vector<16x286xf32>
    %14 = vector.extract_strided_slice %8 {offsets = [0, 20], sizes = [16, 286], strides = [1, 1]} : vector<16x324xf32> to vector<16x286xf32>
    %15 = vector.extract_strided_slice %8 {offsets = [0, 36], sizes = [16, 286], strides = [1, 1]} : vector<16x324xf32> to vector<16x286xf32>
    %16 = vector.extract_strided_slice %8 {offsets = [0, 37], sizes = [16, 286], strides = [1, 1]} : vector<16x324xf32> to vector<16x286xf32>
    %17 = vector.extract_strided_slice %8 {offsets = [0, 38], sizes = [16, 286], strides = [1, 1]} : vector<16x324xf32> to vector<16x286xf32>
    %18 = tpu.concatenate %9, %10, %11, %12, %13, %14, %15, %16, %17 in 0 : vector<16x286xf32>, vector<16x286xf32>, vector<16x286xf32>, vector<16x286xf32>, vector<16x286xf32>, vector<16x286xf32>, vector<16x286xf32>, vector<16x286xf32>, vector<16x286xf32> -> vector<144x286xf32>
    %c0_5 = arith.constant 0 : index
    %c0_6 = arith.constant 0 : index
    %19 = vector.load %arg4[%c0_5, %c0_6] : memref<16x144xf32, #tpu.memory_space<vmem>>, vector<16x144xf32>
    %cst = arith.constant dense<0.000000e+00> : vector<16x286xf32>
    %20 = tpu.matmul %19, %18, %cst {dimension_numbers = #tpu.dot_dimension_numbers<[1], [0], [0], [1], [0, 0, 1, 1], [], []>} : vector<16x144xf32>, vector<144x286xf32>, vector<16x286xf32> -> vector<16x286xf32>
    %cst_7 = arith.constant 0.000000e+00 : f32
    %21 = vector.shape_cast %2 : vector<1x286xi1> to vector<1x286xi1>
    %22 = vector.broadcast %21 : vector<1x286xi1> to vector<16x286xi1>
    %23 = vector.broadcast %cst_7 : f32 to vector<16x286xf32>
    %24 = arith.select %22, %20, %23 : vector<16x286xi1>, vector<16x286xf32>
    %cst_8 = arith.constant dense<0.000000e+00> : vector<16xf32>
    %25 = vector.multi_reduction <add>, %24, %cst_8 [1] : vector<16x286xf32> to vector<16xf32>
    %26 = vector.shape_cast %25 : vector<16xf32> to vector<16x1xf32>
    %27 = arith.mulf %24, %24 : vector<16x286xf32>
    %cst_9 = arith.constant dense<0.000000e+00> : vector<16xf32>
    %28 = vector.multi_reduction <add>, %27, %cst_9 [1] : vector<16x286xf32> to vector<16xf32>
    %29 = vector.shape_cast %28 : vector<16xf32> to vector<16x1xf32>
    %cst_10 = arith.constant 3.906250e-03 : f32
    %30 = vector.broadcast %cst_10 : f32 to vector<16x1xf32>
    %31 = arith.mulf %26, %30 : vector<16x1xf32>
    %cst_11 = arith.constant 3.906250e-03 : f32
    %32 = vector.broadcast %cst_11 : f32 to vector<16x1xf32>
    %33 = arith.mulf %29, %32 : vector<16x1xf32>
    %34 = arith.mulf %31, %31 : vector<16x1xf32>
    %35 = arith.subf %33, %34 : vector<16x1xf32>
    %cst_12 = arith.constant 0.000000e+00 : f32
    %36 = vector.broadcast %cst_12 : f32 to vector<16x1xf32>
    %37 = arith.maximumf %35, %36 : vector<16x1xf32>
    %38 = vector.broadcast %31 : vector<16x1xf32> to vector<16x286xf32>
    %39 = arith.subf %20, %38 : vector<16x286xf32>
    %cst_13 = arith.constant 9.99999974E-6 : f32
    %40 = vector.broadcast %cst_13 : f32 to vector<16x1xf32>
    %41 = arith.addf %37, %40 : vector<16x1xf32>
    %42 = math.rsqrt %41 : vector<16x1xf32>
    %43 = vector.broadcast %42 : vector<16x1xf32> to vector<16x286xf32>
    %44 = arith.mulf %39, %43 : vector<16x286xf32>
    %cst_14 = arith.constant 0.000000e+00 : f32
    %45 = vector.broadcast %cst_14 : f32 to vector<16x286xf32>
    %46 = arith.maximumf %44, %45 : vector<16x286xf32>
    %47 = vector.extract_strided_slice %46 {offsets = [0, 284], sizes = [16, 2], strides = [1, 1]} : vector<16x286xf32> to vector<16x2xf32>
    %48 = vector.extract_strided_slice %46 {offsets = [0, 0], sizes = [16, 284], strides = [1, 1]} : vector<16x286xf32> to vector<16x284xf32>
    %49 = tpu.concatenate %47, %48 in 1 : vector<16x2xf32>, vector<16x284xf32> -> vector<16x286xf32>
    %50 = vector.extract_strided_slice %46 {offsets = [0, 2], sizes = [16, 284], strides = [1, 1]} : vector<16x286xf32> to vector<16x284xf32>
    %51 = vector.extract_strided_slice %46 {offsets = [0, 0], sizes = [16, 2], strides = [1, 1]} : vector<16x286xf32> to vector<16x2xf32>
    %52 = tpu.concatenate %50, %51 in 1 : vector<16x284xf32>, vector<16x2xf32> -> vector<16x286xf32>
    %53 = vector.shape_cast %6 : vector<1x286xi1> to vector<1x286xi1>
    %54 = vector.broadcast %53 : vector<1x286xi1> to vector<16x286xi1>
    %55 = arith.select %54, %52, %46 : vector<16x286xi1>, vector<16x286xf32>
    %56 = vector.shape_cast %4 : vector<1x286xi1> to vector<1x286xi1>
    %57 = vector.broadcast %56 : vector<1x286xi1> to vector<16x286xi1>
    %58 = arith.select %57, %49, %55 : vector<16x286xi1>, vector<16x286xf32>
    %59 = vector.extract_strided_slice %46 {offsets = [0, 1], sizes = [16, 1], strides = [1, 1]} : vector<16x286xf32> to vector<16x1xf32>
    %60 = vector.extract_strided_slice %46 {offsets = [0, 284], sizes = [16, 1], strides = [1, 1]} : vector<16x286xf32> to vector<16x1xf32>
    %61 = tpu.concatenate %59, %58, %60 in 1 : vector<16x1xf32>, vector<16x286xf32>, vector<16x1xf32> -> vector<16x288xf32>
    %62 = vector.extract_strided_slice %61 {offsets = [0, 18], sizes = [16, 18], strides = [1, 1]} : vector<16x288xf32> to vector<16x18xf32>
    %63 = vector.extract_strided_slice %61 {offsets = [0, 252], sizes = [16, 18], strides = [1, 1]} : vector<16x288xf32> to vector<16x18xf32>
    %64 = tpu.concatenate %62, %61, %63 in 1 : vector<16x18xf32>, vector<16x288xf32>, vector<16x18xf32> -> vector<16x324xf32>
    %65 = vector.extract_strided_slice %64 {offsets = [0, 0], sizes = [16, 286], strides = [1, 1]} : vector<16x324xf32> to vector<16x286xf32>
    %66 = vector.extract_strided_slice %64 {offsets = [0, 1], sizes = [16, 286], strides = [1, 1]} : vector<16x324xf32> to vector<16x286xf32>
    %67 = vector.extract_strided_slice %64 {offsets = [0, 2], sizes = [16, 286], strides = [1, 1]} : vector<16x324xf32> to vector<16x286xf32>
    %68 = vector.extract_strided_slice %64 {offsets = [0, 18], sizes = [16, 286], strides = [1, 1]} : vector<16x324xf32> to vector<16x286xf32>
    %69 = vector.extract_strided_slice %64 {offsets = [0, 19], sizes = [16, 286], strides = [1, 1]} : vector<16x324xf32> to vector<16x286xf32>
    %70 = vector.extract_strided_slice %64 {offsets = [0, 20], sizes = [16, 286], strides = [1, 1]} : vector<16x324xf32> to vector<16x286xf32>
    %71 = vector.extract_strided_slice %64 {offsets = [0, 36], sizes = [16, 286], strides = [1, 1]} : vector<16x324xf32> to vector<16x286xf32>
    %72 = vector.extract_strided_slice %64 {offsets = [0, 37], sizes = [16, 286], strides = [1, 1]} : vector<16x324xf32> to vector<16x286xf32>
    %73 = vector.extract_strided_slice %64 {offsets = [0, 38], sizes = [16, 286], strides = [1, 1]} : vector<16x324xf32> to vector<16x286xf32>
    %74 = tpu.concatenate %65, %66, %67, %68, %69, %70, %71, %72, %73 in 0 : vector<16x286xf32>, vector<16x286xf32>, vector<16x286xf32>, vector<16x286xf32>, vector<16x286xf32>, vector<16x286xf32>, vector<16x286xf32>, vector<16x286xf32>, vector<16x286xf32> -> vector<144x286xf32>
    %c0_15 = arith.constant 0 : index
    %c0_16 = arith.constant 0 : index
    %75 = vector.load %arg5[%c0_15, %c0_16] : memref<16x144xf32, #tpu.memory_space<vmem>>, vector<16x144xf32>
    %cst_17 = arith.constant dense<0.000000e+00> : vector<16x286xf32>
    %76 = tpu.matmul %75, %74, %cst_17 {dimension_numbers = #tpu.dot_dimension_numbers<[1], [0], [0], [1], [0, 0, 1, 1], [], []>} : vector<16x144xf32>, vector<144x286xf32>, vector<16x286xf32> -> vector<16x286xf32>
    %cst_18 = arith.constant 0.000000e+00 : f32
    %77 = vector.shape_cast %2 : vector<1x286xi1> to vector<1x286xi1>
    %78 = vector.broadcast %77 : vector<1x286xi1> to vector<16x286xi1>
    %79 = vector.broadcast %cst_18 : f32 to vector<16x286xf32>
    %80 = arith.select %78, %76, %79 : vector<16x286xi1>, vector<16x286xf32>
    %cst_19 = arith.constant dense<0.000000e+00> : vector<16xf32>
    %81 = vector.multi_reduction <add>, %80, %cst_19 [1] : vector<16x286xf32> to vector<16xf32>
    %82 = vector.shape_cast %81 : vector<16xf32> to vector<16x1xf32>
    %83 = arith.mulf %80, %80 : vector<16x286xf32>
    %cst_20 = arith.constant dense<0.000000e+00> : vector<16xf32>
    %84 = vector.multi_reduction <add>, %83, %cst_20 [1] : vector<16x286xf32> to vector<16xf32>
    %85 = vector.shape_cast %84 : vector<16xf32> to vector<16x1xf32>
    %cst_21 = arith.constant 3.906250e-03 : f32
    %86 = vector.broadcast %cst_21 : f32 to vector<16x1xf32>
    %87 = arith.mulf %82, %86 : vector<16x1xf32>
    %cst_22 = arith.constant 3.906250e-03 : f32
    %88 = vector.broadcast %cst_22 : f32 to vector<16x1xf32>
    %89 = arith.mulf %85, %88 : vector<16x1xf32>
    %90 = arith.mulf %87, %87 : vector<16x1xf32>
    %91 = arith.subf %89, %90 : vector<16x1xf32>
    %cst_23 = arith.constant 0.000000e+00 : f32
    %92 = vector.broadcast %cst_23 : f32 to vector<16x1xf32>
    %93 = arith.maximumf %91, %92 : vector<16x1xf32>
    %94 = vector.broadcast %87 : vector<16x1xf32> to vector<16x286xf32>
    %95 = arith.subf %76, %94 : vector<16x286xf32>
    %cst_24 = arith.constant 9.99999974E-6 : f32
    %96 = vector.broadcast %cst_24 : f32 to vector<16x1xf32>
    %97 = arith.addf %93, %96 : vector<16x1xf32>
    %98 = math.rsqrt %97 : vector<16x1xf32>
    %99 = vector.broadcast %98 : vector<16x1xf32> to vector<16x286xf32>
    %100 = arith.mulf %95, %99 : vector<16x286xf32>
    %101 = vector.extract_strided_slice %100 {offsets = [0, 0], sizes = [4, 16], strides = [1, 1]} : vector<16x286xf32> to vector<4x16xf32>
    %102 = vector.extract_strided_slice %100 {offsets = [0, 18], sizes = [4, 16], strides = [1, 1]} : vector<16x286xf32> to vector<4x16xf32>
    %103 = vector.extract_strided_slice %100 {offsets = [0, 36], sizes = [4, 16], strides = [1, 1]} : vector<16x286xf32> to vector<4x16xf32>
    %104 = vector.extract_strided_slice %100 {offsets = [0, 54], sizes = [4, 16], strides = [1, 1]} : vector<16x286xf32> to vector<4x16xf32>
    %105 = vector.extract_strided_slice %100 {offsets = [0, 72], sizes = [4, 16], strides = [1, 1]} : vector<16x286xf32> to vector<4x16xf32>
    %106 = vector.extract_strided_slice %100 {offsets = [0, 90], sizes = [4, 16], strides = [1, 1]} : vector<16x286xf32> to vector<4x16xf32>
    %107 = vector.extract_strided_slice %100 {offsets = [0, 108], sizes = [4, 16], strides = [1, 1]} : vector<16x286xf32> to vector<4x16xf32>
    %108 = vector.extract_strided_slice %100 {offsets = [0, 126], sizes = [4, 16], strides = [1, 1]} : vector<16x286xf32> to vector<4x16xf32>
    %109 = vector.extract_strided_slice %100 {offsets = [0, 144], sizes = [4, 16], strides = [1, 1]} : vector<16x286xf32> to vector<4x16xf32>
    %110 = vector.extract_strided_slice %100 {offsets = [0, 162], sizes = [4, 16], strides = [1, 1]} : vector<16x286xf32> to vector<4x16xf32>
    %111 = vector.extract_strided_slice %100 {offsets = [0, 180], sizes = [4, 16], strides = [1, 1]} : vector<16x286xf32> to vector<4x16xf32>
    %112 = vector.extract_strided_slice %100 {offsets = [0, 198], sizes = [4, 16], strides = [1, 1]} : vector<16x286xf32> to vector<4x16xf32>
    %113 = vector.extract_strided_slice %100 {offsets = [0, 216], sizes = [4, 16], strides = [1, 1]} : vector<16x286xf32> to vector<4x16xf32>
    %114 = vector.extract_strided_slice %100 {offsets = [0, 234], sizes = [4, 16], strides = [1, 1]} : vector<16x286xf32> to vector<4x16xf32>
    %115 = vector.extract_strided_slice %100 {offsets = [0, 252], sizes = [4, 16], strides = [1, 1]} : vector<16x286xf32> to vector<4x16xf32>
    %116 = vector.extract_strided_slice %100 {offsets = [0, 270], sizes = [4, 16], strides = [1, 1]} : vector<16x286xf32> to vector<4x16xf32>
    %117 = tpu.concatenate %101, %102, %103, %104, %105, %106, %107, %108, %109, %110, %111, %112, %113, %114, %115, %116 in 1 : vector<4x16xf32>, vector<4x16xf32>, vector<4x16xf32>, vector<4x16xf32>, vector<4x16xf32>, vector<4x16xf32>, vector<4x16xf32>, vector<4x16xf32>, vector<4x16xf32>, vector<4x16xf32>, vector<4x16xf32>, vector<4x16xf32>, vector<4x16xf32>, vector<4x16xf32>, vector<4x16xf32>, vector<4x16xf32> -> vector<4x256xf32>
    %c0_25 = arith.constant 0 : index
    %c0_26 = arith.constant 0 : index
    %c0_27 = arith.constant 0 : index
    %118 = vector.load %arg3[%c0_25, %c0_26, %c0_27] : memref<1x4x256xf32, #tpu.memory_space<vmem>>, vector<1x4x256xf32>
    %119 = vector.shape_cast %118 : vector<1x4x256xf32> to vector<4x256xf32>
    %120 = arith.addf %119, %117 : vector<4x256xf32>
    %c0_28 = arith.constant 0 : index
    %c0_29 = arith.constant 0 : index
    %c0_30 = arith.constant 0 : index
    %121 = vector.load %arg6[%c0_28, %c0_29, %c0_30] : memref<1x4x256xf32, #tpu.memory_space<vmem>>, vector<1x4x256xf32>
    %122 = vector.shape_cast %121 : vector<1x4x256xf32> to vector<4x256xf32>
    %123 = vector.shape_cast %120 : vector<4x256xf32> to vector<1x4x256xf32>
    tpu.vector_store %arg6[%c0_28, %c0_29, %c0_30], %123 {strides = array<i32>} : memref<1x4x256xf32, #tpu.memory_space<vmem>>, vector<1x4x256xf32>,
    return
  }
  func.func @transform_0(%arg0: i32) -> (i32, i32) {
    %c0_i32 = arith.constant 0 : i32
    %c0_i32_0 = arith.constant 0 : i32
    %c0_i32_1 = arith.constant 0 : i32
    return %c0_i32, %c0_i32_0 : i32, i32
  }
  func.func @transform_1(%arg0: i32) -> (i32, i32, i32) {
    %c0_i32 = arith.constant 0 : i32
    %c0_i32_0 = arith.constant 0 : i32
    %c0_i32_1 = arith.constant 0 : i32
    return %arg0, %c0_i32, %c0_i32_0 : i32, i32, i32
  }
  func.func @transform_2(%arg0: i32) -> (i32, i32, i32) {
    %c0_i32 = arith.constant 0 : i32
    %c0_i32_0 = arith.constant 0 : i32
    %c0_i32_1 = arith.constant 0 : i32
    return %arg0, %c0_i32, %c0_i32_0 : i32, i32, i32
  }
  func.func @transform_3(%arg0: i32) -> (i32, i32) {
    %c0_i32 = arith.constant 0 : i32
    %c0_i32_0 = arith.constant 0 : i32
    %c0_i32_1 = arith.constant 0 : i32
    return %c0_i32, %c0_i32_0 : i32, i32
  }
  func.func @transform_4(%arg0: i32) -> (i32, i32) {
    %c0_i32 = arith.constant 0 : i32
    %c0_i32_0 = arith.constant 0 : i32
    %c0_i32_1 = arith.constant 0 : i32
    return %c0_i32, %c0_i32_0 : i32, i32
  }
  func.func @transform_5(%arg0: i32) -> (i32, i32, i32) {
    %c0_i32 = arith.constant 0 : i32
    %c0_i32_0 = arith.constant 0 : i32
    %c0_i32_1 = arith.constant 0 : i32
    return %arg0, %c0_i32, %c0_i32_0 : i32, i32, i32
  }
}

</mosaic_0001>

<llo_original>
// kernel: tpu_custom_call.1
$region0: #{tpu_custom_call.1}
  #allocation0 [shape = 'u32[]', space=smem, size = 0x4, offset = 0x4, fixed_abs, tag = 'smem constant byte address 0x4 - core index']
  #allocation1 [shape = 'u32[72,128]{1,0:T(1,128)}', space=vmem, size = 0x9000, scoped, tag = 'internal scratch']
  %s0 = inlined_call_operand.hbm [shape: s32[1,286], index: 0, kind: input, shape index: {}]
  %s1 = inlined_call_operand.hbm [shape: f32[2,16,324], index: 1, kind: input, shape index: {}]
  %s2 = inlined_call_operand.hbm [shape: f32[2,4,256], index: 2, kind: input, shape index: {}]
  %s3 = inlined_call_operand.hbm [shape: f32[16,144], index: 3, kind: input, shape index: {}]
  %s4 = inlined_call_operand.hbm [shape: f32[16,144], index: 4, kind: input, shape index: {}]
  %s5 = inlined_call_operand.hbm [shape: f32[2,4,256], index: 5, kind: output, shape index: {}]
  %s6 = sld [smem:[#allocation0]]
  $region73: #{tpu_custom_call.1} parent=0
    _
  %s8 = ssub.s32 1, %s6
  %s9 = scalar_select 0, %s8, %s6
  $region1: #{tpu_custom_call.1} parent=0
    #allocation2 [shape = 'u8[1536]{0}', space=vmem, size = 0x800, scoped, tag = 'input window, operand 0, single buffered']
    #allocation3 [shape = 's32[2]{0}', space=sflag, size = 0x8, scoped, tag = 'scoped memory for tpu_custom_call.1']
    #allocation4 [shape = 's32[2]{0}', space=sflag, size = 0x8, scoped, tag = 'scoped memory for tpu_custom_call.1']
    #allocation5 [shape = 'u8[49152]{0}', space=vmem, size = 0xc000, scoped, tag = 'input window, operand 1']
    #allocation6 [shape = 's32[2]{0}', space=sflag, size = 0x8, scoped, tag = 'scoped memory for tpu_custom_call.1']
    #allocation7 [shape = 'u8[8192]{0}', space=vmem, size = 0x2000, scoped, tag = 'input window, operand 2']
    #allocation8 [shape = 'u8[16384]{0}', space=vmem, size = 0x4000, scoped, tag = 'input window, operand 3, single buffered']
    #allocation9 [shape = 's32[1]{0}', space=sflag, size = 0x4, scoped, tag = 'scoped memory for tpu_custom_call.1']
    #allocation10 [shape = 'u8[16384]{0}', space=vmem, size = 0x4000, scoped, tag = 'input window, operand 4, single buffered']
    #allocation11 [shape = 'u8[8192]{0}', space=vmem, size = 0x2000, scoped, tag = 'output window, operand 0']
    %10 = vsyncpa [#allocation3], 0
    %11 = vsyncpa [#allocation6], 0
    %s12 = scalar_lea.sflag [#allocation6], 1
    %13 = vsyncpa %s12, 0
    %14 = vsyncpa [#allocation9], 0
    %15 = vsyncpa [#allocation4], 0
    %s16 = scalar_lea.sflag [#allocation4], 1
    %17 = vsyncpa %s16, 0
    loop: start=0, step=1, limit=4
    $region2: #{tpu_custom_call.1} parent=1 // loop_pre_header
      _
    $region3: #{tpu_custom_call.1} parent=1 // loop_header
      %s19 = sphi 0, %s23
      %p20 = scmp.ge.s32.totalorder %s19, 4
      %s27 = sphi 0, %s27
      %s29 = sphi 0, %s27
      %s30 = sphi 0, %s29
      %s44 = sphi 0, %s30
      %s50 = sphi 0, %s52
      %s53 = sphi 0, %s50
      %s54 = sphi 0, %s53
      %s70 = sphi 0, %s54
      %s76 = sphi 0, %s78
      %s79 = sphi 0, %s76
      %s80 = sphi 0, %s79
      %s96 = sphi 0, %s80
      %s100 = sphi 0, %s100
      %s102 = sphi 0, %s100
      %s103 = sphi 0, %s102
      %s117 = sphi 0, %s103
      %s121 = sphi 0, %s121
      %s123 = sphi 0, %s121
      %s124 = sphi 0, %s123
      %s138 = sphi 0, %s124
      %s144 = sphi 0, %s146
      %s147 = sphi 0, %s144
      %s148 = sphi 0, %s147
      %s164 = sphi 0, %s148
    $region4: #{tpu_custom_call.1} parent=1 // loop_header_branch
      %22 = sbr.rel (%p20) target = $region8
    $region5: #{tpu_custom_call.1} parent=1 // loop_body
      %s24 = ssub.s32 %s19, 1
      %s25 = ssub.s32 %s19, 2
      %s26 = sadd.s32 %s19, 1
      %s28 = sadd.s32 %s27, 1
      %p31 = scmp.eq.s32.totalorder %s19, 1
      %p32 = scmp.ne.s32.totalorder %s27, %s29
      %p33 = scmp.eq.s32.totalorder %s19, 0
      %p34 = por %p32, %p33
      %p35 = scmp.ne.s32.totalorder %s27, %s29
      %p36 = scmp.eq.s32.totalorder %s24, 1
      %p37 = por %p35, %p36
      %p38 = scmp.ne.s32.totalorder %s29, %s30
      %p39 = scmp.eq.s32.totalorder %s24, 0
      %p40 = por %p38, %p39
      %p41 = scmp.ne.s32.totalorder %s29, %s30
      %p42 = scmp.eq.s32.totalorder %s25, 1
      %p43 = por %p41, %p42
      %p45 = scmp.ne.s32.totalorder %s30, %s44
      %p46 = scmp.eq.s32.totalorder %s25, 0
      %p47 = por %p45, %p46
      %s48 = ssub.s32 %s19, %s26
      %p49 = scmp.eq.s32.totalorder %s48, 0
      %s51 = sadd.s32 %s50, 1
      %s52 = scalar_select %p49, %s50, %s51
      %p55 = pneg %p49
      %p56 = scmp.eq.s32.totalorder %s19, 1
      %p57 = por %p55, %p56
      %p58 = scmp.ne.s32.totalorder %s50, %s53
      %p59 = scmp.eq.s32.totalorder %s19, 0
      %p60 = por %p58, %p59
      %p61 = scmp.ne.s32.totalorder %s50, %s53
      %p62 = scmp.eq.s32.totalorder %s24, 1
      %p63 = por %p61, %p62
      %p64 = scmp.ne.s32.totalorder %s53, %s54
      %p65 = scmp.eq.s32.totalorder %s24, 0
      %p66 = por %p64, %p65
      %p67 = scmp.ne.s32.totalorder %s53, %s54
      %p68 = scmp.eq.s32.totalorder %s25, 1
      %p69 = por %p67, %p68
      %p71 = scmp.ne.s32.totalorder %s54, %s70
      %p72 = scmp.eq.s32.totalorder %s25, 0
      %p73 = por %p71, %p72
      %s74 = ssub.s32 %s19, %s26
      %p75 = scmp.eq.s32.totalorder %s74, 0
      %s77 = sadd.s32 %s76, 1
      %s78 = scalar_select %p75, %s76, %s77
      %p81 = pneg %p75
      %p82 = scmp.eq.s32.totalorder %s19, 1
      %p83 = por %p81, %p82
      %p84 = scmp.ne.s32.totalorder %s76, %s79
      %p85 = scmp.eq.s32.totalorder %s19, 0
      %p86 = por %p84, %p85
      %p87 = scmp.ne.s32.totalorder %s76, %s79
      %p88 = scmp.eq.s32.totalorder %s24, 1
      %p89 = por %p87, %p88
      %p90 = scmp.ne.s32.totalorder %s79, %s80
      %p91 = scmp.eq.s32.totalorder %s24, 0
      %p92 = por %p90, %p91
      %p93 = scmp.ne.s32.totalorder %s79, %s80
      %p94 = scmp.eq.s32.totalorder %s25, 1
      %p95 = por %p93, %p94
      %p97 = scmp.ne.s32.totalorder %s80, %s96
      %p98 = scmp.eq.s32.totalorder %s25, 0
      %p99 = por %p97, %p98
      %s101 = sadd.s32 %s100, 1
      %p104 = scmp.eq.s32.totalorder %s19, 1
      %p105 = scmp.ne.s32.totalorder %s100, %s102
      %p106 = scmp.eq.s32.totalorder %s19, 0
      %p107 = por %p105, %p106
      %p108 = scmp.ne.s32.totalorder %s100, %s102
      %p109 = scmp.eq.s32.totalorder %s24, 1
      %p110 = por %p108, %p109
      %p111 = scmp.ne.s32.totalorder %s102, %s103
      %p112 = scmp.eq.s32.totalorder %s24, 0
      %p113 = por %p111, %p112
      %p114 = scmp.ne.s32.totalorder %s102, %s103
      %p115 = scmp.eq.s32.totalorder %s25, 1
      %p116 = por %p114, %p115
      %p118 = scmp.ne.s32.totalorder %s103, %s117
      %p119 = scmp.eq.s32.totalorder %s25, 0
      %p120 = por %p118, %p119
      %s122 = sadd.s32 %s121, 1
      %p125 = scmp.eq.s32.totalorder %s19, 1
      %p126 = scmp.ne.s32.totalorder %s121, %s123
      %p127 = scmp.eq.s32.totalorder %s19, 0
      %p128 = por %p126, %p127
      %p129 = scmp.ne.s32.totalorder %s121, %s123
      %p130 = scmp.eq.s32.totalorder %s24, 1
      %p131 = por %p129, %p130
      %p132 = scmp.ne.s32.totalorder %s123, %s124
      %p133 = scmp.eq.s32.totalorder %s24, 0
      %p134 = por %p132, %p133
      %p135 = scmp.ne.s32.totalorder %s123, %s124
      %p136 = scmp.eq.s32.totalorder %s25, 1
      %p137 = por %p135, %p136
      %p139 = scmp.ne.s32.totalorder %s124, %s138
      %p140 = scmp.eq.s32.totalorder %s25, 0
      %p141 = por %p139, %p140
      %s142 = ssub.s32 %s19, %s26
      %p143 = scmp.eq.s32.totalorder %s142, 0
      %s145 = sadd.s32 %s144, 1
      %s146 = scalar_select %p143, %s144, %s145
      %p149 = pneg %p143
      %p150 = scmp.eq.s32.totalorder %s19, 1
      %p151 = por %p149, %p150
      %p152 = scmp.ne.s32.totalorder %s144, %s147
      %p153 = scmp.eq.s32.totalorder %s19, 0
      %p154 = por %p152, %p153
      %p155 = scmp.ne.s32.totalorder %s144, %s147
      %p156 = scmp.eq.s32.totalorder %s24, 1
      %p157 = por %p155, %p156
      %p158 = scmp.ne.s32.totalorder %s147, %s148
      %p159 = scmp.eq.s32.totalorder %s24, 0
      %p160 = por %p158, %p159
      %p161 = scmp.ne.s32.totalorder %s147, %s148
      %p162 = scmp.eq.s32.totalorder %s25, 1
      %p163 = por %p161, %p162
      %p165 = scmp.ne.s32.totalorder %s148, %s164
      %p166 = scmp.eq.s32.totalorder %s25, 0
      %p167 = por %p165, %p166
      %p168 = scmp.le.s32.totalorder 1, %s19
      %p169 = scmp.lt.s32.totalorder %s19, 3
      %p170 = pnand %p168, %p169
      %p171 = pneg %p170
      // Predicated region
      $region9: #{tpu_custom_call.1} parent=5 // pred_check
        _
      $region10: #{tpu_custom_call.1} parent=5 // pred_check_branch
        %173 = sbr.rel (%p170) target = $region12
      $region11: #{tpu_custom_call.1} parent=5 // pred_region
        %s174 = ssub.s32 %s19, 1
        // Predicated region
        $region13: #{tpu_custom_call.1} parent=11 // pred_check
          %p175 = pneg %p40
        $region14: #{tpu_custom_call.1} parent=11 // pred_check_branch
          %177 = sbr.rel (%p175) target = $region16
        $region15: #{tpu_custom_call.1} parent=11 // pred_region
          %179 = vsyncadd [#allocation3], 0
          %s181 = sshll.u32 %s0, 4
          %s182 = int_to_ptr.hbm [resolvable:$true] %s181
          %s183 = sshll.u32 [#allocation2], 4
          %s184 = int_to_ptr.vmem [resolvable:$true] %s183
          %186 = dma.hbm_to_vmem [thread:$0]  %s182, 48, %s184, [#allocation3]
        $region16: #{tpu_custom_call.1} parent=11 // pred_fallthru
          _
        // Predicated region
        $region17: #{tpu_custom_call.1} parent=11 // pred_check
          %p187 = pneg %p113
        $region18: #{tpu_custom_call.1} parent=11 // pred_check_branch
          %189 = sbr.rel (%p187) target = $region20
        $region19: #{tpu_custom_call.1} parent=11 // pred_region
          %191 = vsyncadd [#allocation9], 0
          %s192 = sshll.u32 %s3, 4
          %s193 = int_to_ptr.hbm [resolvable:$true] %s192
          %s194 = sshll.u32 [#allocation8], 4
          %s195 = int_to_ptr.vmem [resolvable:$true] %s194
          %200 = dma.hbm_to_vmem [thread:$0]  %s193, 512, %s195, [#allocation9], 256, 256, 16
        $region20: #{tpu_custom_call.1} parent=11 // pred_fallthru
          _
        // Predicated region
        $region21: #{tpu_custom_call.1} parent=11 // pred_check
          %p201 = pneg %p134
        $region22: #{tpu_custom_call.1} parent=11 // pred_check_branch
          %203 = sbr.rel (%p201) target = $region24
        $region23: #{tpu_custom_call.1} parent=11 // pred_region
          %205 = vsyncadd [#allocation9], 0
          %s206 = sshll.u32 %s4, 4
          %s207 = int_to_ptr.hbm [resolvable:$true] %s206
          %s208 = sshll.u32 [#allocation10], 4
          %s209 = int_to_ptr.vmem [resolvable:$true] %s208
          %214 = dma.hbm_to_vmem [thread:$0]  %s207, 512, %s209, [#allocation9], 256, 256, 16
        $region24: #{tpu_custom_call.1} parent=11 // pred_fallthru
          _
      $region12: #{tpu_custom_call.1} parent=5 // pred_fallthru
        _
      %p215 = scmp.lt.s32.totalorder %s19, 2
      // Predicated region
      $region25: #{tpu_custom_call.1} parent=5 // pred_check
        %p216 = pneg %p215
      $region26: #{tpu_custom_call.1} parent=5 // pred_check_branch
        %218 = sbr.rel (%p216) target = $region28
      $region27: #{tpu_custom_call.1} parent=5 // pred_region
        // Predicated region
        $region29: #{tpu_custom_call.1} parent=27 // pred_check
          %p219 = pneg %p60
        $region30: #{tpu_custom_call.1} parent=27 // pred_check_branch
          %221 = sbr.rel (%p219) target = $region32
        $region31: #{tpu_custom_call.1} parent=27 // pred_region
          %s222 = sand.u32 %s19, 1
          %s223 = scalar_lea.sflag [#allocation6], %s222
          %s224 = sand.u32 %s50, 1
          %s225 = smul.addr %s224, 48
          %s226 = scalar_lea.vmem [#allocation5], %s225
          %228 = vsyncadd %s223, 0
          %s229 = smul.addr %s19, 6
          %s230 = smul.addr %s229, 8
          %s231 = scalar_lea.hbm %s1, %s230
          %s232 = sshll.u32 %s231, 4
          %s233 = int_to_ptr.hbm [resolvable:$true] %s232
          %s234 = sshll.u32 %s226, 4
          %s235 = int_to_ptr.vmem [resolvable:$true] %s234
          %240 = dma.hbm_to_vmem [thread:$0]  %s233, 768, %s235, %s223, 384, 384, 24
        $region32: #{tpu_custom_call.1} parent=27 // pred_fallthru
          _
        // Predicated region
        $region33: #{tpu_custom_call.1} parent=27 // pred_check
          %p241 = pneg %p86
        $region34: #{tpu_custom_call.1} parent=27 // pred_check_branch
          %243 = sbr.rel (%p241) target = $region36
        $region35: #{tpu_custom_call.1} parent=27 // pred_region
          %s244 = sand.u32 %s19, 1
          %s245 = scalar_lea.sflag [#allocation6], %s244
          %s246 = sand.u32 %s76, 1
          %s247 = smul.addr %s246, 8
          %s248 = scalar_lea.vmem [#allocation7], %s247
          %250 = vsyncadd %s245, 0
          %s251 = smul.addr %s19, 2
          %s252 = smul.addr %s251, 4
          %s253 = scalar_lea.hbm %s2, %s252
          %s255 = sshll.u32 %s253, 4
          %s256 = int_to_ptr.hbm [resolvable:$true] %s255
          %s257 = sshll.u32 %s248, 4
          %s258 = int_to_ptr.vmem [resolvable:$true] %s257
          %260 = dma.hbm_to_vmem [thread:$0]  %s256, 128, %s258, %s245
        $region36: #{tpu_custom_call.1} parent=27 // pred_fallthru
          _
      $region28: #{tpu_custom_call.1} parent=5 // pred_fallthru
        _
      %p261 = scmp.le.s32.totalorder 1, %s19
      %p262 = scmp.lt.s32.totalorder %s19, 3
      %p263 = pnand %p261, %p262
      %p264 = pneg %p263
      // Predicated region
      $region37: #{tpu_custom_call.1} parent=5 // pred_check
        _
      $region38: #{tpu_custom_call.1} parent=5 // pred_check_branch
        %266 = sbr.rel (%p263) target = $region40
      $region39: #{tpu_custom_call.1} parent=5 // pred_region
        %s267 = ssub.s32 %s19, 1
        // Predicated region
        $region41: #{tpu_custom_call.1} parent=39 // pred_check
          %p268 = pneg %p40
        $region42: #{tpu_custom_call.1} parent=39 // pred_check_branch
          %270 = sbr.rel (%p268) target = $region44
        $region43: #{tpu_custom_call.1} parent=39 // pred_region
          %272 = dma.done [#allocation3], 48
        $region44: #{tpu_custom_call.1} parent=39 // pred_fallthru
          _
        %s273 = sand.u32 %s24, 1
        %s274 = scalar_lea.sflag [#allocation6], %s273
        %s275 = sand.u32 %s53, 1
        %s276 = smul.addr %s275, 48
        %s277 = scalar_lea.vmem [#allocation5], %s276
        // Predicated region
        $region45: #{tpu_custom_call.1} parent=39 // pred_check
          %p278 = pneg %p66
        $region46: #{tpu_custom_call.1} parent=39 // pred_check_branch
          %280 = sbr.rel (%p278) target = $region48
        $region47: #{tpu_custom_call.1} parent=39 // pred_region
          %282 = dma.done %s274, 768
        $region48: #{tpu_custom_call.1} parent=39 // pred_fallthru
          _
        %s283 = sand.u32 %s24, 1
        %s284 = scalar_lea.sflag [#allocation6], %s283
        %s285 = sand.u32 %s79, 1
        %s286 = smul.addr %s285, 8
        %s287 = scalar_lea.vmem [#allocation7], %s286
        // Predicated region
        $region49: #{tpu_custom_call.1} parent=39 // pred_check
          %p288 = pneg %p92
        $region50: #{tpu_custom_call.1} parent=39 // pred_check_branch
          %290 = sbr.rel (%p288) target = $region52
        $region51: #{tpu_custom_call.1} parent=39 // pred_region
          %292 = dma.done %s284, 128
        $region52: #{tpu_custom_call.1} parent=39 // pred_fallthru
          _
        // Predicated region
        $region53: #{tpu_custom_call.1} parent=39 // pred_check
          %p293 = pneg %p113
        $region54: #{tpu_custom_call.1} parent=39 // pred_check_branch
          %295 = sbr.rel (%p293) target = $region56
        $region55: #{tpu_custom_call.1} parent=39 // pred_region
          %297 = dma.done [#allocation9], 512
        $region56: #{tpu_custom_call.1} parent=39 // pred_fallthru
          _
        // Predicated region
        $region57: #{tpu_custom_call.1} parent=39 // pred_check
          %p298 = pneg %p134
        $region58: #{tpu_custom_call.1} parent=39 // pred_check_branch
          %300 = sbr.rel (%p298) target = $region60
        $region59: #{tpu_custom_call.1} parent=39 // pred_region
          %302 = dma.done [#allocation9], 512
        $region60: #{tpu_custom_call.1} parent=39 // pred_fallthru
          _
        %p303 = pneg %p40
        %p304 = pneg %p37
        %s305 = sand.u32 %s24, 1
        %s306 = scalar_lea.sflag [#allocation6], %s305
        %s307 = sand.u32 %s53, 1
        %s308 = smul.addr %s307, 48
        %s309 = scalar_lea.vmem [#allocation5], %s308
        %p310 = pneg %p66
        %p311 = pneg %p63
        %s312 = sand.u32 %s24, 1
        %s313 = scalar_lea.sflag [#allocation6], %s312
        %s314 = sand.u32 %s79, 1
        %s315 = smul.addr %s314, 8
        %s316 = scalar_lea.vmem [#allocation7], %s315
        %p317 = pneg %p92
        %p318 = pneg %p89
        %p319 = pneg %p113
        %p320 = pneg %p110
        %p321 = pneg %p134
        %p322 = pneg %p131
        %p323 = pneg %p160
        %p324 = pneg %p157
        %s325 = sand.u32 %s147, 1
        %s326 = scalar_lea.sflag [#allocation4], %s325
        %s327 = sand.u32 %s147, 1
        %s328 = smul.addr %s327, 8
        %s329 = scalar_lea.vmem [#allocation11], %s328
        %v330 = vld [vmem:[#allocation2] sm:$0x7]
        %vm331 = vcmp.lt.s32.totalorder %v330, 16
        %vm332 = vcmp.eq.s32.totalorder %v330, 16
        %vm333 = vcmp.eq.s32.totalorder %v330, 17
        %v334 = vld [vmem:[%s277] sm:$0xff]
        %v335 = vld [vmem:[%s277 + $0x8] sm:$0xff]
        %v336 = vld [vmem:[%s277 + $0x10] sm:$0xff]
        %v337 = vld [vmem:[%s277 + $0x18] sm:$0xff]
        %v338 = vld [vmem:[%s277 + $0x20] sm:$0xff]
        %v339 = vld [vmem:[%s277 + $0x28] sm:$0xff]
        %346 = vrot.lane.b32.xlu0 %v334, 127
        %v347 = vpop.permute.xlu0 %346
        %348 = vrot.lane.b32.xlu0 %v335, 127
        %v349 = vpop.permute.xlu0 %348
        %350 = vrot.lane.b32.xlu0 %v336, 127
        %v351 = vpop.permute.xlu0 %350
        %352 = vrot.lane.b32.xlu0 %v337, 127
        %v353 = vpop.permute.xlu0 %352
        %354 = vrot.lane.b32.xlu0 %v338, 127
        %v355 = vpop.permute.xlu0 %354
        %356 = vrot.lane.b32.xlu0 %v339, 127
        %v357 = vpop.permute.xlu0 %356
        %vm358 = vcmask 1039360
        %v359 = vsel %vm358, %v347, %v349
        %v360 = vsel %vm358, %v349, %v351
        %v361 = vsel %vm358, %v353, %v355
        %v362 = vsel %vm358, %v355, %v357
        %369 = vrot.lane.b32.xlu0 %v334, 126
        %v370 = vpop.permute.xlu0 %369
        %371 = vrot.lane.b32.xlu0 %v335, 126
        %v372 = vpop.permute.xlu0 %371
        %373 = vrot.lane.b32.xlu0 %v336, 126
        %v374 = vpop.permute.xlu0 %373
        %375 = vrot.lane.b32.xlu0 %v337, 126
        %v376 = vpop.permute.xlu0 %375
        %377 = vrot.lane.b32.xlu0 %v338, 126
        %v378 = vpop.permute.xlu0 %377
        %379 = vrot.lane.b32.xlu0 %v339, 126
        %v380 = vpop.permute.xlu0 %379
        %vm381 = vcmask 1031168
        %v382 = vsel %vm381, %v370, %v372
        %v383 = vsel %vm381, %v372, %v374
        %v384 = vsel %vm381, %v376, %v378
        %v385 = vsel %vm381, %v378, %v380
        %392 = vrot.lane.b32.xlu0 %v334, 110
        %v393 = vpop.permute.xlu0 %392
        %394 = vrot.lane.b32.xlu0 %v335, 110
        %v395 = vpop.permute.xlu0 %394
        %396 = vrot.lane.b32.xlu0 %v336, 110
        %v397 = vpop.permute.xlu0 %396
        %398 = vrot.lane.b32.xlu0 %v337, 110
        %v399 = vpop.permute.xlu0 %398
        %400 = vrot.lane.b32.xlu0 %v338, 110
        %v401 = vpop.permute.xlu0 %400
        %402 = vrot.lane.b32.xlu0 %v339, 110
        %v403 = vpop.permute.xlu0 %402
        %vm404 = vcmask 900096
        %v405 = vsel %vm404, %v393, %v395
        %v406 = vsel %vm404, %v395, %v397
        %v407 = vsel %vm404, %v399, %v401
        %v408 = vsel %vm404, %v401, %v403
        %415 = vrot.lane.b32.xlu0 %v334, 109
        %v416 = vpop.permute.xlu0 %415
        %417 = vrot.lane.b32.xlu0 %v335, 109
        %v418 = vpop.permute.xlu0 %417
        %419 = vrot.lane.b32.xlu0 %v336, 109
        %v420 = vpop.permute.xlu0 %419
        %421 = vrot.lane.b32.xlu0 %v337, 109
        %v422 = vpop.permute.xlu0 %421
        %423 = vrot.lane.b32.xlu0 %v338, 109
        %v424 = vpop.permute.xlu0 %423
        %425 = vrot.lane.b32.xlu0 %v339, 109
        %v426 = vpop.permute.xlu0 %425
        %vm427 = vcmask 891904
        %v428 = vsel %vm427, %v416, %v418
        %v429 = vsel %vm427, %v418, %v420
        %v430 = vsel %vm427, %v422, %v424
        %v431 = vsel %vm427, %v424, %v426
        %438 = vrot.lane.b32.xlu0 %v334, 108
        %v439 = vpop.permute.xlu0 %438
        %440 = vrot.lane.b32.xlu0 %v335, 108
        %v441 = vpop.permute.xlu0 %440
        %442 = vrot.lane.b32.xlu0 %v336, 108
        %v443 = vpop.permute.xlu0 %442
        %444 = vrot.lane.b32.xlu0 %v337, 108
        %v445 = vpop.permute.xlu0 %444
        %446 = vrot.lane.b32.xlu0 %v338, 108
        %v447 = vpop.permute.xlu0 %446
        %448 = vrot.lane.b32.xlu0 %v339, 108
        %v449 = vpop.permute.xlu0 %448
        %vm450 = vcmask 883712
        %v451 = vsel %vm450, %v439, %v441
        %v452 = vsel %vm450, %v441, %v443
        %v453 = vsel %vm450, %v445, %v447
        %v454 = vsel %vm450, %v447, %v449
        %461 = vrot.lane.b32.xlu0 %v334, 92
        %v462 = vpop.permute.xlu0 %461
        %463 = vrot.lane.b32.xlu0 %v335, 92
        %v464 = vpop.permute.xlu0 %463
        %465 = vrot.lane.b32.xlu0 %v336, 92
        %v466 = vpop.permute.xlu0 %465
        %467 = vrot.lane.b32.xlu0 %v337, 92
        %v468 = vpop.permute.xlu0 %467
        %469 = vrot.lane.b32.xlu0 %v338, 92
        %v470 = vpop.permute.xlu0 %469
        %471 = vrot.lane.b32.xlu0 %v339, 92
        %v472 = vpop.permute.xlu0 %471
        %vm473 = vcmask 752640
        %v474 = vsel %vm473, %v462, %v464
        %v475 = vsel %vm473, %v464, %v466
        %v476 = vsel %vm473, %v468, %v470
        %v477 = vsel %vm473, %v470, %v472
        %484 = vrot.lane.b32.xlu0 %v334, 91
        %v485 = vpop.permute.xlu0 %484
        %486 = vrot.lane.b32.xlu0 %v335, 91
        %v487 = vpop.permute.xlu0 %486
        %488 = vrot.lane.b32.xlu0 %v336, 91
        %v489 = vpop.permute.xlu0 %488
        %490 = vrot.lane.b32.xlu0 %v337, 91
        %v491 = vpop.permute.xlu0 %490
        %492 = vrot.lane.b32.xlu0 %v338, 91
        %v493 = vpop.permute.xlu0 %492
        %494 = vrot.lane.b32.xlu0 %v339, 91
        %v495 = vpop.permute.xlu0 %494
        %vm496 = vcmask 744448
        %v497 = vsel %vm496, %v485, %v487
        %v498 = vsel %vm496, %v487, %v489
        %v499 = vsel %vm496, %v491, %v493
        %v500 = vsel %vm496, %v493, %v495
        %507 = vrot.lane.b32.xlu0 %v334, 90
        %v508 = vpop.permute.xlu0 %507
        %509 = vrot.lane.b32.xlu0 %v335, 90
        %v510 = vpop.permute.xlu0 %509
        %511 = vrot.lane.b32.xlu0 %v336, 90
        %v512 = vpop.permute.xlu0 %511
        %513 = vrot.lane.b32.xlu0 %v337, 90
        %v514 = vpop.permute.xlu0 %513
        %515 = vrot.lane.b32.xlu0 %v338, 90
        %v516 = vpop.permute.xlu0 %515
        %517 = vrot.lane.b32.xlu0 %v339, 90
        %v518 = vpop.permute.xlu0 %517
        %vm519 = vcmask 736256
        %v520 = vsel %vm519, %v508, %v510
        %v521 = vsel %vm519, %v510, %v512
        %v522 = vsel %vm519, %v514, %v516
        %v523 = vsel %vm519, %v516, %v518
        %v530 = vld [vmem:[#allocation8] sm:$0xff]
        %v531 = vld [vmem:[#allocation8 + $0x8] sm:$0xff]
        %v532 = vld [vmem:[#allocation8 + $0x10] sm:$0xff]
        %v533 = vld [vmem:[#allocation8 + $0x18] sm:$0xff]
        %vm534 = vcmask 130048
        %v536 = vsel %vm534, %v531, 0
        %v539 = vsel %vm534, %v533, 0
        %541 = vmatpush.msra.mxu0 %v499
        %542 = vmatpush.msra.mxu0 %v497
        %543 = vmatpush.msra.mxu0 %v476
        %544 = vmatpush.msra.mxu0 %v474
        %545 = vmatpush.msra.mxu0 %v453
        %546 = vmatpush.msra.mxu0 %v451
        %547 = vmatpush.msra.mxu0 %v430
        %548 = vmatpush.msra.mxu0 %v428
        %549 = vmatpush.msra.mxu0 %v407
        %550 = vmatpush.msra.mxu0 %v405
        %551 = vmatpush.msra.mxu0 %v384
        %552 = vmatpush.msra.mxu0 %v382
        %553 = vmatpush.msra.mxu0 %v361
        %554 = vmatpush.msra.mxu0 %v359
        %555 = vmatpush.msra.mxu0 %v337
        %556 = vmatpush.msra.mxu0 %v334
        %557 = vmatmul.f32.gmra.mxu0 %v530
        %v558 = vpop.f32.mrf.mxu0
        %v559 = vadd.f32 0.0, %v558
        %560 = vmatmul.f32.gmra.mxu0 %v532
        %v561 = vpop.f32.mrf.mxu0
        %v562 = vadd.f32 0.0, %v561
        %563 = vdwg.mxu0
        %564 = vmatpush.msra.mxu0 0.0
        %565 = vmatpush.msra.mxu0 0.0
        %566 = vmatpush.msra.mxu0 0.0
        %567 = vmatpush.msra.mxu0 0.0
        %568 = vmatpush.msra.mxu0 0.0
        %569 = vmatpush.msra.mxu0 0.0
        %570 = vmatpush.msra.mxu0 0.0
        %571 = vmatpush.msra.mxu0 0.0
        %572 = vmatpush.msra.mxu0 0.0
        %573 = vmatpush.msra.mxu0 0.0
        %574 = vmatpush.msra.mxu0 0.0
        %575 = vmatpush.msra.mxu0 0.0
        %576 = vmatpush.msra.mxu0 0.0
        %577 = vmatpush.msra.mxu0 0.0
        %578 = vmatpush.msra.mxu0 %v522
        %579 = vmatpush.msra.mxu0 %v520
        %580 = vmatmul.f32.gmra.mxu0 %v536
        %v581 = vpop.f32.mrf.mxu0
        %v582 = vadd.f32 %v559, %v581
        %583 = vmatmul.f32.gmra.mxu0 %v539
        %v584 = vpop.f32.mrf.mxu0
        %v585 = vadd.f32 %v562, %v584
        %586 = vdwg.mxu0
        %587 = vmatpush.msra.mxu0 %v500
        %588 = vmatpush.msra.mxu0 %v498
        %589 = vmatpush.msra.mxu0 %v477
        %590 = vmatpush.msra.mxu0 %v475
        %591 = vmatpush.msra.mxu0 %v454
        %592 = vmatpush.msra.mxu0 %v452
        %593 = vmatpush.msra.mxu0 %v431
        %594 = vmatpush.msra.mxu0 %v429
        %595 = vmatpush.msra.mxu0 %v408
        %596 = vmatpush.msra.mxu0 %v406
        %597 = vmatpush.msra.mxu0 %v385
        %598 = vmatpush.msra.mxu0 %v383
        %599 = vmatpush.msra.mxu0 %v362
        %600 = vmatpush.msra.mxu0 %v360
        %601 = vmatpush.msra.mxu0 %v338
        %602 = vmatpush.msra.mxu0 %v335
        %603 = vmatmul.f32.gmra.mxu0 %v530
        %v604 = vpop.f32.mrf.mxu0
        %v605 = vadd.f32 0.0, %v604
        %606 = vmatmul.f32.gmra.mxu0 %v532
        %v607 = vpop.f32.mrf.mxu0
        %v608 = vadd.f32 0.0, %v607
        %609 = vdwg.mxu0
        %610 = vmatpush.msra.mxu0 0.0
        %611 = vmatpush.msra.mxu0 0.0
        %612 = vmatpush.msra.mxu0 0.0
        %613 = vmatpush.msra.mxu0 0.0
        %614 = vmatpush.msra.mxu0 0.0
        %615 = vmatpush.msra.mxu0 0.0
        %616 = vmatpush.msra.mxu0 0.0
        %617 = vmatpush.msra.mxu0 0.0
        %618 = vmatpush.msra.mxu0 0.0
        %619 = vmatpush.msra.mxu0 0.0
        %620 = vmatpush.msra.mxu0 0.0
        %621 = vmatpush.msra.mxu0 0.0
        %622 = vmatpush.msra.mxu0 0.0
        %623 = vmatpush.msra.mxu0 0.0
        %624 = vmatpush.msra.mxu0 %v523
        %625 = vmatpush.msra.mxu0 %v521
        %626 = vmatmul.f32.gmra.mxu0 %v536
        %v627 = vpop.f32.mrf.mxu0
        %v628 = vadd.f32 %v605, %v627
        %629 = vmatmul.f32.gmra.mxu0 %v539
        %v630 = vpop.f32.mrf.mxu0
        %v631 = vadd.f32 %v608, %v630
        %632 = vdwg.mxu0
        %633 = vmatpush.msra.mxu0 %v495
        %634 = vmatpush.msra.mxu0 %v489
        %635 = vmatpush.msra.mxu0 %v472
        %636 = vmatpush.msra.mxu0 %v466
        %637 = vmatpush.msra.mxu0 %v449
        %638 = vmatpush.msra.mxu0 %v443
        %639 = vmatpush.msra.mxu0 %v426
        %640 = vmatpush.msra.mxu0 %v420
        %641 = vmatpush.msra.mxu0 %v403
        %642 = vmatpush.msra.mxu0 %v397
        %643 = vmatpush.msra.mxu0 %v380
        %644 = vmatpush.msra.mxu0 %v374
        %645 = vmatpush.msra.mxu0 %v357
        %646 = vmatpush.msra.mxu0 %v351
        %647 = vmatpush.msra.mxu0 %v339
        %648 = vmatpush.msra.mxu0 %v336
        %649 = vmatmul.f32.gmra.mxu0 %v530
        %v650 = vpop.f32.mrf.mxu0
        %v651 = vadd.f32 0.0, %v650
        %652 = vmatmul.f32.gmra.mxu0 %v532
        %v653 = vpop.f32.mrf.mxu0
        %v654 = vadd.f32 0.0, %v653
        %655 = vdwg.mxu0
        %656 = vmatpush.msra.mxu0 0.0
        %657 = vmatpush.msra.mxu0 0.0
        %658 = vmatpush.msra.mxu0 0.0
        %659 = vmatpush.msra.mxu0 0.0
        %660 = vmatpush.msra.mxu0 0.0
        %661 = vmatpush.msra.mxu0 0.0
        %662 = vmatpush.msra.mxu0 0.0
        %663 = vmatpush.msra.mxu0 0.0
        %664 = vmatpush.msra.mxu0 0.0
        %665 = vmatpush.msra.mxu0 0.0
        %666 = vmatpush.msra.mxu0 0.0
        %667 = vmatpush.msra.mxu0 0.0
        %668 = vmatpush.msra.mxu0 0.0
        %669 = vmatpush.msra.mxu0 0.0
        %670 = vmatpush.msra.mxu0 %v518
        %671 = vmatpush.msra.mxu0 %v512
        %672 = vmatmul.f32.gmra.mxu0 %v536
        %v673 = vpop.f32.mrf.mxu0
        %v674 = vadd.f32 %v651, %v673
        %675 = vmatmul.f32.gmra.mxu0 %v539
        %v676 = vpop.f32.mrf.mxu0
        %v677 = vadd.f32 %v654, %v676
        %678 = vdwg.mxu0
        %v679 = vsel %vm331, 1, 0
        %v680 = vperm.slane %v679, 0
        %v681 = vperm.slane %v679, 1
        %v682 = vperm.slane %v679, 2
        %vm683 = vcmp.eq.s32.totalorder %v680, 1
        %vm684 = vcmp.eq.s32.totalorder %v681, 1
        %vm685 = vcmp.eq.s32.totalorder %v682, 1
        %v686 = vsel %vm683, %v582, 0.0
        %v687 = vsel %vm684, %v628, 0.0
        %v688 = vsel %vm685, %v674, 0.0
        %v689 = vsel %vm683, %v585, 0.0
        %v690 = vsel %vm684, %v631, 0.0
        %v691 = vsel %vm685, %v677, 0.0
        %v692 = vadd.f32 %v686, %v687
        %vm693 = vcmask 244736
        %v694 = vsel %vm693, %v688, 0.0
        %v695 = vadd.f32 %v692, %v694
        %696 = vadd.xlane.f32.xlu0 %v695
        %v697 = vpop.xlane.xlu0 %696
        %v698 = vadd.f32 %v689, %v690
        %v699 = vsel %vm693, %v691, 0.0
        %v700 = vadd.f32 %v698, %v699
        %701 = vadd.xlane.f32.xlu0 %v700
        %v702 = vpop.xlane.xlu0 %701
        %v703 = vmul.f32 %v686, %v686
        %v704 = vmul.f32 %v687, %v687
        %v705 = vmul.f32 %v688, %v688
        %v706 = vmul.f32 %v689, %v689
        %v707 = vmul.f32 %v690, %v690
        %v708 = vmul.f32 %v691, %v691
        %v709 = vadd.f32 %v703, %v704
        %v710 = vsel %vm693, %v705, 0.0
        %v711 = vadd.f32 %v709, %v710
        %712 = vadd.xlane.f32.xlu0 %v711
        %v713 = vpop.xlane.xlu0 %712
        %v714 = vadd.f32 %v706, %v707
        %v715 = vsel %vm693, %v708, 0.0
        %v716 = vadd.f32 %v714, %v715
        %717 = vadd.xlane.f32.xlu0 %v716
        %v718 = vpop.xlane.xlu0 %717
        %v719 = vmul.f32 %v697, 0.00390625
        %v720 = vmul.f32 %v702, 0.00390625
        %v721 = vmul.f32 %v713, 0.00390625
        %v722 = vmul.f32 %v718, 0.00390625
        %v723 = vmul.f32 %v719, %v719
        %v724 = vmul.f32 %v720, %v720
        %v725 = vsub.f32 %v721, %v723
        %v726 = vsub.f32 %v722, %v724
        %v727 = vmax.f32 %v725, 0.0
        %v728 = vmax.f32 %v726, 0.0
        %v729 = vsub.f32 %v582, %v719
        %v730 = vsub.f32 %v628, %v719
        %v731 = vsub.f32 %v674, %v719
        %v732 = vsub.f32 %v585, %v720
        %v733 = vsub.f32 %v631, %v720
        %v734 = vsub.f32 %v677, %v720
        %v735 = vadd.f32 %v727, 1e-05
        %v736 = vadd.f32 %v728, 1e-05
        %v737 = vrsqrt.pop %v735
        %v738 = vmul.f32 %v737, %v735
        %v739 = vmul.f32 %v738, %v737
        %v740 = vmul.f32 0.5, %v739
        %v741 = vsub.f32 1.5, %v740
        %v742 = vmul.f32 %v737, %v741
        %vm743 = vweird.f32 %v735
        %vm744 = vweird.f32 %v737
        %vm745 = vmor %vm743, %vm744
        %v746 = vsel %vm745, %v737, %v742
        %v747 = vrsqrt.pop %v736
        %v748 = vmul.f32 %v747, %v736
        %v749 = vmul.f32 %v748, %v747
        %v750 = vmul.f32 0.5, %v749
        %v751 = vsub.f32 1.5, %v750
        %v752 = vmul.f32 %v747, %v751
        %vm753 = vweird.f32 %v736
        %vm754 = vweird.f32 %v747
        %vm755 = vmor %vm753, %vm754
        %v756 = vsel %vm755, %v747, %v752
        %v757 = vmul.f32 %v729, %v746
        %v758 = vmul.f32 %v730, %v746
        %v759 = vmul.f32 %v731, %v746
        %v760 = vmul.f32 %v732, %v756
        %v761 = vmul.f32 %v733, %v756
        %v762 = vmul.f32 %v734, %v756
        %v763 = vmax.f32 %v757, 0.0
        %v764 = vmax.f32 %v758, 0.0
        %v765 = vmax.f32 %v759, 0.0
        %v766 = vmax.f32 %v760, 0.0
        %v767 = vmax.f32 %v761, 0.0
        %v768 = vmax.f32 %v762, 0.0
        %771 = vrot.lane.b32.xlu0 %v765, 100
        %v772 = vpop.permute.xlu0 %771
        %773 = vrot.lane.b32.xlu0 %v768, 100
        %v774 = vpop.permute.xlu0 %773
        %781 = vrot.lane.b32.xlu0 %v763, 2
        %v782 = vpop.permute.xlu0 %781
        %783 = vrot.lane.b32.xlu0 %v764, 2
        %v784 = vpop.permute.xlu0 %783
        %785 = vrot.lane.b32.xlu0 %v765, 2
        %v786 = vpop.permute.xlu0 %785
        %787 = vrot.lane.b32.xlu0 %v766, 2
        %v788 = vpop.permute.xlu0 %787
        %789 = vrot.lane.b32.xlu0 %v767, 2
        %v790 = vpop.permute.xlu0 %789
        %791 = vrot.lane.b32.xlu0 %v768, 2
        %v792 = vpop.permute.xlu0 %791
        %vm793 = vcmask 15360
        %v794 = vsel %vm793, %v782, %v784
        %v795 = vsel %vm793, %v784, %v786
        %v796 = vsel %vm793, %v788, %v790
        %v797 = vsel %vm793, %v790, %v792
        %v804 = vsel %vm793, %v772, %v782
        %v805 = vsel %vm793, %v774, %v788
        %806 = vrot.lane.b32.xlu0 %v763, 126
        %v807 = vpop.permute.xlu0 %806
        %808 = vrot.lane.b32.xlu0 %v764, 126
        %v809 = vpop.permute.xlu0 %808
        %810 = vrot.lane.b32.xlu0 %v765, 126
        %v811 = vpop.permute.xlu0 %810
        %812 = vrot.lane.b32.xlu0 %v766, 126
        %v813 = vpop.permute.xlu0 %812
        %814 = vrot.lane.b32.xlu0 %v767, 126
        %v815 = vpop.permute.xlu0 %814
        %816 = vrot.lane.b32.xlu0 %v768, 126
        %v817 = vpop.permute.xlu0 %816
        %v818 = vsel %vm381, %v807, %v809
        %v819 = vsel %vm381, %v809, %v811
        %v820 = vsel %vm381, %v813, %v815
        %v821 = vsel %vm381, %v815, %v817
        %828 = vrot.lane.b32.xlu0 %v763, 28
        %v829 = vpop.permute.xlu0 %828
        %830 = vrot.lane.b32.xlu0 %v766, 28
        %v831 = vpop.permute.xlu0 %830
        %vm834 = vcmask 228352
        %v835 = vsel %vm834, %v811, %v829
        %v836 = vsel %vm834, %v817, %v831
        %v837 = vsel %vm333, 1, 0
        %v838 = vperm.slane %v837, 0
        %v839 = vperm.slane %v837, 1
        %v840 = vperm.slane %v837, 2
        %vm841 = vcmp.eq.s32.totalorder %v838, 1
        %vm842 = vcmp.eq.s32.totalorder %v839, 1
        %vm843 = vcmp.eq.s32.totalorder %v840, 1
        %v844 = vsel %vm841, %v818, %v763
        %v845 = vsel %vm842, %v819, %v764
        %v846 = vsel %vm843, %v835, %v765
        %v847 = vsel %vm841, %v820, %v766
        %v848 = vsel %vm842, %v821, %v767
        %v849 = vsel %vm843, %v836, %v768
        %v850 = vsel %vm332, 1, 0
        %v851 = vperm.slane %v850, 0
        %v852 = vperm.slane %v850, 1
        %v853 = vperm.slane %v850, 2
        %vm854 = vcmp.eq.s32.totalorder %v851, 1
        %vm855 = vcmp.eq.s32.totalorder %v852, 1
        %vm856 = vcmp.eq.s32.totalorder %v853, 1
        %v857 = vsel %vm854, %v804, %v844
        %v858 = vsel %vm855, %v794, %v845
        %v859 = vsel %vm856, %v795, %v846
        %v860 = vsel %vm854, %v805, %v847
        %v861 = vsel %vm855, %v796, %v848
        %v862 = vsel %vm856, %v797, %v849
        %863 = vrot.lane.b32.xlu0 %v763, 127
        %v864 = vpop.permute.xlu0 %863
        %865 = vrot.lane.b32.xlu0 %v766, 127
        %v866 = vpop.permute.xlu0 %865
        %875 = vrot.lane.b32.xlu0 %v857, 1
        %v876 = vpop.permute.xlu0 %875
        %877 = vrot.lane.b32.xlu0 %v858, 1
        %v878 = vpop.permute.xlu0 %877
        %879 = vrot.lane.b32.xlu0 %v859, 1
        %v880 = vpop.permute.xlu0 %879
        %881 = vrot.lane.b32.xlu0 %v860, 1
        %v882 = vpop.permute.xlu0 %881
        %883 = vrot.lane.b32.xlu0 %v861, 1
        %v884 = vpop.permute.xlu0 %883
        %885 = vrot.lane.b32.xlu0 %v862, 1
        %v886 = vpop.permute.xlu0 %885
        %vm887 = vcmask 7168
        %v888 = vsel %vm887, %v876, %v878
        %v889 = vsel %vm887, %v878, %v880
        %v890 = vsel %vm887, %v882, %v884
        %v891 = vsel %vm887, %v884, %v886
        %896 = vrot.lane.b32.xlu0 %v765, 3
        %v897 = vpop.permute.xlu0 %896
        %898 = vrot.lane.b32.xlu0 %v768, 3
        %v899 = vpop.permute.xlu0 %898
        %v902 = vsel %vm887, %v864, %v876
        %v903 = vsel %vm887, %v866, %v882
        %vm904 = vcmask 252928
        %v905 = vsel %vm904, %v889, %v897
        %v906 = vsel %vm904, %v891, %v899
        %909 = vrot.lane.b32.xlu0 %v902, 110
        %v910 = vpop.permute.xlu0 %909
        %911 = vrot.lane.b32.xlu0 %v903, 110
        %v912 = vpop.permute.xlu0 %911
        %917 = vrot.lane.b32.xlu0 %v902, 18
        %v918 = vpop.permute.xlu0 %917
        %919 = vrot.lane.b32.xlu0 %v888, 18
        %v920 = vpop.permute.xlu0 %919
        %921 = vrot.lane.b32.xlu0 %v905, 18
        %v922 = vpop.permute.xlu0 %921
        %923 = vrot.lane.b32.xlu0 %v903, 18
        %v924 = vpop.permute.xlu0 %923
        %925 = vrot.lane.b32.xlu0 %v890, 18
        %v926 = vpop.permute.xlu0 %925
        %927 = vrot.lane.b32.xlu0 %v906, 18
        %v928 = vpop.permute.xlu0 %927
        %vm929 = vcmask 146432
        %v930 = vsel %vm929, %v918, %v920
        %v931 = vsel %vm929, %v920, %v922
        %v932 = vsel %vm929, %v924, %v926
        %v933 = vsel %vm929, %v926, %v928
        %940 = vrot.lane.b32.xlu0 %v888, 54
        %v941 = vpop.permute.xlu0 %940
        %942 = vrot.lane.b32.xlu0 %v905, 54
        %v943 = vpop.permute.xlu0 %942
        %944 = vrot.lane.b32.xlu0 %v890, 54
        %v945 = vpop.permute.xlu0 %944
        %946 = vrot.lane.b32.xlu0 %v906, 54
        %v947 = vpop.permute.xlu0 %946
        %vm948 = vcmask 441344
        %v949 = vsel %vm948, %v941, %v943
        %v950 = vsel %vm948, %v945, %v947
        %v953 = vsel %vm929, %v910, %v918
        %v954 = vsel %vm929, %v912, %v924
        %vm955 = vcmask 408576
        %v956 = vsel %vm955, %v931, %v949
        %v957 = vsel %vm955, %v933, %v950
        %962 = vrot.lane.b32.xlu0 %v953, 127
        %v963 = vpop.permute.xlu0 %962
        %964 = vrot.lane.b32.xlu0 %v930, 127
        %v965 = vpop.permute.xlu0 %964
        %966 = vrot.lane.b32.xlu0 %v956, 127
        %v967 = vpop.permute.xlu0 %966
        %968 = vrot.lane.b32.xlu0 %v954, 127
        %v969 = vpop.permute.xlu0 %968
        %970 = vrot.lane.b32.xlu0 %v932, 127
        %v971 = vpop.permute.xlu0 %970
        %972 = vrot.lane.b32.xlu0 %v957, 127
        %v973 = vpop.permute.xlu0 %972
        %v974 = vsel %vm358, %v963, %v965
        %v975 = vsel %vm358, %v965, %v967
        %v976 = vsel %vm358, %v969, %v971
        %v977 = vsel %vm358, %v971, %v973
        %984 = vrot.lane.b32.xlu0 %v953, 126
        %v985 = vpop.permute.xlu0 %984
        %986 = vrot.lane.b32.xlu0 %v930, 126
        %v987 = vpop.permute.xlu0 %986
        %988 = vrot.lane.b32.xlu0 %v956, 126
        %v989 = vpop.permute.xlu0 %988
        %990 = vrot.lane.b32.xlu0 %v954, 126
        %v991 = vpop.permute.xlu0 %990
        %992 = vrot.lane.b32.xlu0 %v932, 126
        %v993 = vpop.permute.xlu0 %992
        %994 = vrot.lane.b32.xlu0 %v957, 126
        %v995 = vpop.permute.xlu0 %994
        %v996 = vsel %vm381, %v985, %v987
        %v997 = vsel %vm381, %v987, %v989
        %v998 = vsel %vm381, %v991, %v993
        %v999 = vsel %vm381, %v993, %v995
        %1006 = vrot.lane.b32.xlu0 %v953, 110
        %v1007 = vpop.permute.xlu0 %1006
        %1008 = vrot.lane.b32.xlu0 %v930, 110
        %v1009 = vpop.permute.xlu0 %1008
        %1010 = vrot.lane.b32.xlu0 %v956, 110
        %v1011 = vpop.permute.xlu0 %1010
        %1012 = vrot.lane.b32.xlu0 %v954, 110
        %v1013 = vpop.permute.xlu0 %1012
        %1014 = vrot.lane.b32.xlu0 %v932, 110
        %v1015 = vpop.permute.xlu0 %1014
        %1016 = vrot.lane.b32.xlu0 %v957, 110
        %v1017 = vpop.permute.xlu0 %1016
        %v1018 = vsel %vm404, %v1007, %v1009
        %v1019 = vsel %vm404, %v1009, %v1011
        %v1020 = vsel %vm404, %v1013, %v1015
        %v1021 = vsel %vm404, %v1015, %v1017
        %1028 = vrot.lane.b32.xlu0 %v953, 109
        %v1029 = vpop.permute.xlu0 %1028
        %1030 = vrot.lane.b32.xlu0 %v930, 109
        %v1031 = vpop.permute.xlu0 %1030
        %1032 = vrot.lane.b32.xlu0 %v956, 109
        %v1033 = vpop.permute.xlu0 %1032
        %1034 = vrot.lane.b32.xlu0 %v954, 109
        %v1035 = vpop.permute.xlu0 %1034
        %1036 = vrot.lane.b32.xlu0 %v932, 109
        %v1037 = vpop.permute.xlu0 %1036
        %1038 = vrot.lane.b32.xlu0 %v957, 109
        %v1039 = vpop.permute.xlu0 %1038
        %v1040 = vsel %vm427, %v1029, %v1031
        %v1041 = vsel %vm427, %v1031, %v1033
        %v1042 = vsel %vm427, %v1035, %v1037
        %v1043 = vsel %vm427, %v1037, %v1039
        %1050 = vrot.lane.b32.xlu0 %v953, 108
        %v1051 = vpop.permute.xlu0 %1050
        %1052 = vrot.lane.b32.xlu0 %v930, 108
        %v1053 = vpop.permute.xlu0 %1052
        %1054 = vrot.lane.b32.xlu0 %v956, 108
        %v1055 = vpop.permute.xlu0 %1054
        %1056 = vrot.lane.b32.xlu0 %v954, 108
        %v1057 = vpop.permute.xlu0 %1056
        %1058 = vrot.lane.b32.xlu0 %v932, 108
        %v1059 = vpop.permute.xlu0 %1058
        %1060 = vrot.lane.b32.xlu0 %v957, 108
        %v1061 = vpop.permute.xlu0 %1060
        %v1062 = vsel %vm450, %v1051, %v1053
        %v1063 = vsel %vm450, %v1053, %v1055
        %v1064 = vsel %vm450, %v1057, %v1059
        %v1065 = vsel %vm450, %v1059, %v1061
        %1072 = vrot.lane.b32.xlu0 %v953, 92
        %v1073 = vpop.permute.xlu0 %1072
        %1074 = vrot.lane.b32.xlu0 %v930, 92
        %v1075 = vpop.permute.xlu0 %1074
        %1076 = vrot.lane.b32.xlu0 %v956, 92
        %v1077 = vpop.permute.xlu0 %1076
        %1078 = vrot.lane.b32.xlu0 %v954, 92
        %v1079 = vpop.permute.xlu0 %1078
        %1080 = vrot.lane.b32.xlu0 %v932, 92
        %v1081 = vpop.permute.xlu0 %1080
        %1082 = vrot.lane.b32.xlu0 %v957, 92
        %v1083 = vpop.permute.xlu0 %1082
        %v1084 = vsel %vm473, %v1073, %v1075
        %v1085 = vsel %vm473, %v1075, %v1077
        %v1086 = vsel %vm473, %v1079, %v1081
        %v1087 = vsel %vm473, %v1081, %v1083
        %1094 = vrot.lane.b32.xlu0 %v953, 91
        %v1095 = vpop.permute.xlu0 %1094
        %1096 = vrot.lane.b32.xlu0 %v930, 91
        %v1097 = vpop.permute.xlu0 %1096
        %1098 = vrot.lane.b32.xlu0 %v956, 91
        %v1099 = vpop.permute.xlu0 %1098
        %1100 = vrot.lane.b32.xlu0 %v954, 91
        %v1101 = vpop.permute.xlu0 %1100
        %1102 = vrot.lane.b32.xlu0 %v932, 91
        %v1103 = vpop.permute.xlu0 %1102
        %1104 = vrot.lane.b32.xlu0 %v957, 91
        %v1105 = vpop.permute.xlu0 %1104
        %v1106 = vsel %vm496, %v1095, %v1097
        %v1107 = vsel %vm496, %v1097, %v1099
        %v1108 = vsel %vm496, %v1101, %v1103
        %v1109 = vsel %vm496, %v1103, %v1105
        %1116 = vrot.lane.b32.xlu0 %v953, 90
        %v1117 = vpop.permute.xlu0 %1116
        %1118 = vrot.lane.b32.xlu0 %v930, 90
        %v1119 = vpop.permute.xlu0 %1118
        %1120 = vrot.lane.b32.xlu0 %v956, 90
        %v1121 = vpop.permute.xlu0 %1120
        %1122 = vrot.lane.b32.xlu0 %v954, 90
        %v1123 = vpop.permute.xlu0 %1122
        %1124 = vrot.lane.b32.xlu0 %v932, 90
        %v1125 = vpop.permute.xlu0 %1124
        %1126 = vrot.lane.b32.xlu0 %v957, 90
        %v1127 = vpop.permute.xlu0 %1126
        %v1128 = vsel %vm519, %v1117, %v1119
        %v1129 = vsel %vm519, %v1119, %v1121
        %v1130 = vsel %vm519, %v1123, %v1125
        %v1131 = vsel %vm519, %v1125, %v1127
        %v1138 = vld [vmem:[#allocation10] sm:$0xff]
        %v1139 = vld [vmem:[#allocation10 + $0x8] sm:$0xff]
        %v1140 = vld [vmem:[#allocation10 + $0x10] sm:$0xff]
        %v1141 = vld [vmem:[#allocation10 + $0x18] sm:$0xff]
        %v1143 = vsel %vm534, %v1139, 0
        %v1146 = vsel %vm534, %v1141, 0
        %1148 = vmatpush.msra.mxu0 %v1108
        %1149 = vmatpush.msra.mxu0 %v1106
        %1150 = vmatpush.msra.mxu0 %v1086
        %1151 = vmatpush.msra.mxu0 %v1084
        %1152 = vmatpush.msra.mxu0 %v1064
        %1153 = vmatpush.msra.mxu0 %v1062
        %1154 = vmatpush.msra.mxu0 %v1042
        %1155 = vmatpush.msra.mxu0 %v1040
        %1156 = vmatpush.msra.mxu0 %v1020
        %1157 = vmatpush.msra.mxu0 %v1018
        %1158 = vmatpush.msra.mxu0 %v998
        %1159 = vmatpush.msra.mxu0 %v996
        %1160 = vmatpush.msra.mxu0 %v976
        %1161 = vmatpush.msra.mxu0 %v974
        %1162 = vmatpush.msra.mxu0 %v954
        %1163 = vmatpush.msra.mxu0 %v953
        %1164 = vmatmul.f32.gmra.mxu0 %v1138
        %v1165 = vpop.f32.mrf.mxu0
        %v1166 = vadd.f32 0.0, %v1165
        %1167 = vmatmul.f32.gmra.mxu0 %v1140
        %v1168 = vpop.f32.mrf.mxu0
        %1169 = vdwg.mxu0
        %1170 = vmatpush.msra.mxu0 0.0
        %1171 = vmatpush.msra.mxu0 0.0
        %1172 = vmatpush.msra.mxu0 0.0
        %1173 = vmatpush.msra.mxu0 0.0
        %1174 = vmatpush.msra.mxu0 0.0
        %1175 = vmatpush.msra.mxu0 0.0
        %1176 = vmatpush.msra.mxu0 0.0
        %1177 = vmatpush.msra.mxu0 0.0
        %1178 = vmatpush.msra.mxu0 0.0
        %1179 = vmatpush.msra.mxu0 0.0
        %1180 = vmatpush.msra.mxu0 0.0
        %1181 = vmatpush.msra.mxu0 0.0
        %1182 = vmatpush.msra.mxu0 0.0
        %1183 = vmatpush.msra.mxu0 0.0
        %1184 = vmatpush.msra.mxu0 %v1130
        %1185 = vmatpush.msra.mxu0 %v1128
        %1186 = vmatmul.f32.gmra.mxu0 %v1143
        %v1187 = vpop.f32.mrf.mxu0
        %v1188 = vadd.f32 %v1166, %v1187
        %1189 = vmatmul.f32.gmra.mxu0 %v1146
        %v1190 = vpop.f32.mrf.mxu0
        %1191 = vdwg.mxu0
        %1192 = vmatpush.msra.mxu0 %v1109
        %1193 = vmatpush.msra.mxu0 %v1107
        %1194 = vmatpush.msra.mxu0 %v1087
        %1195 = vmatpush.msra.mxu0 %v1085
        %1196 = vmatpush.msra.mxu0 %v1065
        %1197 = vmatpush.msra.mxu0 %v1063
        %1198 = vmatpush.msra.mxu0 %v1043
        %1199 = vmatpush.msra.mxu0 %v1041
        %1200 = vmatpush.msra.mxu0 %v1021
        %1201 = vmatpush.msra.mxu0 %v1019
        %1202 = vmatpush.msra.mxu0 %v999
        %1203 = vmatpush.msra.mxu0 %v997
        %1204 = vmatpush.msra.mxu0 %v977
        %1205 = vmatpush.msra.mxu0 %v975
        %1206 = vmatpush.msra.mxu0 %v932
        %1207 = vmatpush.msra.mxu0 %v930
        %1208 = vmatmul.f32.gmra.mxu0 %v1138
        %v1209 = vpop.f32.mrf.mxu0
        %v1210 = vadd.f32 0.0, %v1209
        %1211 = vmatmul.f32.gmra.mxu0 %v1140
        %v1212 = vpop.f32.mrf.mxu0
        %1213 = vdwg.mxu0
        %1214 = vmatpush.msra.mxu0 0.0
        %1215 = vmatpush.msra.mxu0 0.0
        %1216 = vmatpush.msra.mxu0 0.0
        %1217 = vmatpush.msra.mxu0 0.0
        %1218 = vmatpush.msra.mxu0 0.0
        %1219 = vmatpush.msra.mxu0 0.0
        %1220 = vmatpush.msra.mxu0 0.0
        %1221 = vmatpush.msra.mxu0 0.0
        %1222 = vmatpush.msra.mxu0 0.0
        %1223 = vmatpush.msra.mxu0 0.0
        %1224 = vmatpush.msra.mxu0 0.0
        %1225 = vmatpush.msra.mxu0 0.0
        %1226 = vmatpush.msra.mxu0 0.0
        %1227 = vmatpush.msra.mxu0 0.0
        %1228 = vmatpush.msra.mxu0 %v1131
        %1229 = vmatpush.msra.mxu0 %v1129
        %1230 = vmatmul.f32.gmra.mxu0 %v1143
        %v1231 = vpop.f32.mrf.mxu0
        %v1232 = vadd.f32 %v1210, %v1231
        %1233 = vmatmul.f32.gmra.mxu0 %v1146
        %v1234 = vpop.f32.mrf.mxu0
        %1235 = vdwg.mxu0
        %1236 = vmatpush.msra.mxu0 %v1105
        %1237 = vmatpush.msra.mxu0 %v1099
        %1238 = vmatpush.msra.mxu0 %v1083
        %1239 = vmatpush.msra.mxu0 %v1077
        %1240 = vmatpush.msra.mxu0 %v1061
        %1241 = vmatpush.msra.mxu0 %v1055
        %1242 = vmatpush.msra.mxu0 %v1039
        %1243 = vmatpush.msra.mxu0 %v1033
        %1244 = vmatpush.msra.mxu0 %v1017
        %1245 = vmatpush.msra.mxu0 %v1011
        %1246 = vmatpush.msra.mxu0 %v995
        %1247 = vmatpush.msra.mxu0 %v989
        %1248 = vmatpush.msra.mxu0 %v973
        %1249 = vmatpush.msra.mxu0 %v967
        %1250 = vmatpush.msra.mxu0 %v957
        %1251 = vmatpush.msra.mxu0 %v956
        %1252 = vmatmul.f32.gmra.mxu0 %v1138
        %v1253 = vpop.f32.mrf.mxu0
        %v1254 = vadd.f32 0.0, %v1253
        %1255 = vmatmul.f32.gmra.mxu0 %v1140
        %v1256 = vpop.f32.mrf.mxu0
        %1257 = vdwg.mxu0
        %1258 = vmatpush.msra.mxu0 0.0
        %1259 = vmatpush.msra.mxu0 0.0
        %1260 = vmatpush.msra.mxu0 0.0
        %1261 = vmatpush.msra.mxu0 0.0
        %1262 = vmatpush.msra.mxu0 0.0
        %1263 = vmatpush.msra.mxu0 0.0
        %1264 = vmatpush.msra.mxu0 0.0
        %1265 = vmatpush.msra.mxu0 0.0
        %1266 = vmatpush.msra.mxu0 0.0
        %1267 = vmatpush.msra.mxu0 0.0
        %1268 = vmatpush.msra.mxu0 0.0
        %1269 = vmatpush.msra.mxu0 0.0
        %1270 = vmatpush.msra.mxu0 0.0
        %1271 = vmatpush.msra.mxu0 0.0
        %1272 = vmatpush.msra.mxu0 %v1127
        %1273 = vmatpush.msra.mxu0 %v1121
        %1274 = vmatmul.f32.gmra.mxu0 %v1143
        %v1275 = vpop.f32.mrf.mxu0
        %v1276 = vadd.f32 %v1254, %v1275
        %1277 = vmatmul.f32.gmra.mxu0 %v1146
        %v1278 = vpop.f32.mrf.mxu0
        %1279 = vdwg.mxu0
        %v1280 = vsel %vm683, %v1188, 0.0
        %v1281 = vsel %vm684, %v1232, 0.0
        %v1282 = vsel %vm685, %v1276, 0.0
        %v1283 = vadd.f32 %v1280, %v1281
        %v1284 = vsel %vm693, %v1282, 0.0
        %v1285 = vadd.f32 %v1283, %v1284
        %1286 = vadd.xlane.f32.xlu0 %v1285
        %v1287 = vpop.xlane.xlu0 %1286
        %v1288 = vmul.f32 %v1280, %v1280
        %v1289 = vmul.f32 %v1281, %v1281
        %v1290 = vmul.f32 %v1282, %v1282
        %v1291 = vadd.f32 %v1288, %v1289
        %v1292 = vsel %vm693, %v1290, 0.0
        %v1293 = vadd.f32 %v1291, %v1292
        %1294 = vadd.xlane.f32.xlu0 %v1293
        %v1295 = vpop.xlane.xlu0 %1294
        %v1296 = vmul.f32 %v1287, 0.00390625
        %v1297 = vmul.f32 %v1295, 0.00390625
        %v1298 = vmul.f32 %v1296, %v1296
        %v1299 = vsub.f32 %v1297, %v1298
        %v1300 = vmax.f32 %v1299, 0.0
        %v1301 = vsub.f32 %v1188, %v1296
        %v1302 = vsub.f32 %v1232, %v1296
        %v1303 = vsub.f32 %v1276, %v1296
        %v1304 = vadd.f32 %v1300, 1e-05
        %v1305 = vrsqrt.pop %v1304
        %v1306 = vmul.f32 %v1305, %v1304
        %v1307 = vmul.f32 %v1306, %v1305
        %v1308 = vmul.f32 0.5, %v1307
        %v1309 = vsub.f32 1.5, %v1308
        %v1310 = vmul.f32 %v1305, %v1309
        %vm1311 = vweird.f32 %v1304
        %vm1312 = vweird.f32 %v1305
        %vm1313 = vmor %vm1311, %vm1312
        %v1314 = vsel %vm1313, %v1305, %v1310
        %v1315 = vmul.f32 %v1301, %v1314
        %v1316 = vmul.f32 %v1302, %v1314
        %v1317 = vmul.f32 %v1303, %v1314
        %1319 = vrot.lane.b32.xlu0 %v1315, 126
        %v1320 = vpop.permute.xlu0 %1319
        %1322 = vrot.lane.b32.xlu0 %v1315, 124
        %v1323 = vpop.permute.xlu0 %1322
        %1325 = vrot.lane.b32.xlu0 %v1315, 122
        %v1326 = vpop.permute.xlu0 %1325
        %1328 = vrot.lane.b32.xlu0 %v1315, 120
        %v1329 = vpop.permute.xlu0 %1328
        %1331 = vrot.lane.b32.xlu0 %v1315, 118
        %v1332 = vpop.permute.xlu0 %1331
        %1334 = vrot.lane.b32.xlu0 %v1315, 116
        %v1335 = vpop.permute.xlu0 %1334
        %1338 = vrot.lane.b32.xlu0 %v1315, 114
        %v1339 = vpop.permute.xlu0 %1338
        %1340 = vrot.lane.b32.xlu0 %v1316, 114
        %v1341 = vpop.permute.xlu0 %1340
        %vm1342 = vcmask 932864
        %v1343 = vsel %vm1342, %v1339, %v1341
        %1345 = vrot.lane.b32.xlu0 %v1316, 112
        %v1346 = vpop.permute.xlu0 %1345
        %1348 = vrot.lane.b32.xlu0 %v1316, 110
        %v1349 = vpop.permute.xlu0 %1348
        %1351 = vrot.lane.b32.xlu0 %v1316, 108
        %v1352 = vpop.permute.xlu0 %1351
        %1354 = vrot.lane.b32.xlu0 %v1316, 106
        %v1355 = vpop.permute.xlu0 %1354
        %1357 = vrot.lane.b32.xlu0 %v1316, 104
        %v1358 = vpop.permute.xlu0 %1357
        %1360 = vrot.lane.b32.xlu0 %v1316, 102
        %v1361 = vpop.permute.xlu0 %1360
        %1364 = vrot.lane.b32.xlu0 %v1316, 100
        %v1365 = vpop.permute.xlu0 %1364
        %1366 = vrot.lane.b32.xlu0 %v1317, 100
        %v1367 = vpop.permute.xlu0 %1366
        %vm1368 = vcmask 818176
        %v1369 = vsel %vm1368, %v1365, %v1367
        %1371 = vrot.lane.b32.xlu0 %v1317, 98
        %v1372 = vpop.permute.xlu0 %1371
        %v1374 = vsel %vm534, %v1315, %v1320
        %vm1375 = vcmask 261120
        %v1376 = vsel %vm1375, %v1374, %v1323
        %vm1377 = vcmask 392192
        %v1378 = vsel %vm1377, %v1376, %v1326
        %vm1379 = vcmask 523264
        %v1380 = vsel %vm1379, %v1378, %v1329
        %vm1381 = vcmask 654336
        %v1382 = vsel %vm1381, %v1380, %v1332
        %vm1383 = vcmask 785408
        %v1384 = vsel %vm1383, %v1382, %v1335
        %vm1385 = vcmask 916480
        %v1386 = vsel %vm1385, %v1384, %v1343
        %v1387 = vsel %vm534, %v1346, %v1349
        %v1388 = vsel %vm1375, %v1387, %v1352
        %v1389 = vsel %vm1377, %v1388, %v1355
        %v1390 = vsel %vm1379, %v1389, %v1358
        %v1391 = vsel %vm1381, %v1390, %v1361
        %v1392 = vsel %vm1383, %v1391, %v1369
        %v1393 = vsel %vm1385, %v1392, %v1372
        %v1394 = vld [vmem:[%s287] sm:$0xff]
        %v1397 = vrot.slane %v1393, 4
        %vm1398 = vcmask 1043456
        %v1399 = vsel %vm1398, %v1386, %v1397
        %v1401 = vadd.f32 %v1394, %v1399
        %1402 = vst [vmem:[%s329] sm:$0xff] %v1401
        %s1403 = sand.u32 %s147, 1
        %s1404 = scalar_lea.sflag [#allocation4], %s1403
        %s1405 = sand.u32 %s147, 1
        %s1406 = smul.addr %s1405, 8
        %s1407 = scalar_lea.vmem [#allocation11], %s1406
        // Predicated region
        $region61: #{tpu_custom_call.1} parent=39 // pred_check
          %p1408 = pneg %p157
        $region62: #{tpu_custom_call.1} parent=39 // pred_check_branch
          %1410 = sbr.rel (%p1408) target = $region64
        $region63: #{tpu_custom_call.1} parent=39 // pred_region
          %1412 = vsyncadd %s1404, 0
          %s1413 = smul.addr %s24, 2
          %s1414 = smul.addr %s1413, 4
          %s1415 = scalar_lea.hbm %s5, %s1414
          %s1417 = sshll.u32 %s1407, 4
          %s1418 = int_to_ptr.vmem [resolvable:$true] %s1417
          %s1419 = sshll.u32 %s1415, 4
          %s1420 = int_to_ptr.hbm [resolvable:$true] %s1419
          %1422 = dma.vmem_to_hbm [thread:$0]  %s1418, 128, %s1420, %s1404
        $region64: #{tpu_custom_call.1} parent=39 // pred_fallthru
          _
      $region40: #{tpu_custom_call.1} parent=5 // pred_fallthru
        _
      %p1423 = scmp.le.s32.totalorder 2, %s19
      // Predicated region
      $region65: #{tpu_custom_call.1} parent=5 // pred_check
        %p1424 = pneg %p1423
      $region66: #{tpu_custom_call.1} parent=5 // pred_check_branch
        %1426 = sbr.rel (%p1424) target = $region68
      $region67: #{tpu_custom_call.1} parent=5 // pred_region
        %s1427 = ssub.s32 %s19, 2
        // Predicated region
        $region69: #{tpu_custom_call.1} parent=67 // pred_check
          %p1428 = pneg %p163
        $region70: #{tpu_custom_call.1} parent=67 // pred_check_branch
          %1430 = sbr.rel (%p1428) target = $region72
        $region71: #{tpu_custom_call.1} parent=67 // pred_region
          %s1431 = sand.u32 %s148, 1
          %s1432 = scalar_lea.sflag [#allocation4], %s1431
          %s1433 = sand.u32 %s148, 1
          %s1434 = smul.addr %s1433, 8
          %s1435 = scalar_lea.vmem [#allocation11], %s1434
          %1437 = dma.done %s1432, 128
        $region72: #{tpu_custom_call.1} parent=67 // pred_fallthru
          _
      $region68: #{tpu_custom_call.1} parent=5 // pred_fallthru
        _
    $region6: #{tpu_custom_call.1} parent=1 // loop_footer
      %s23 = sadd.s32 1, %s19
    $region7: #{tpu_custom_call.1} parent=1 // loop_footer_branch
      %18 = sbr.rel target = $region3
    $region8: #{tpu_custom_call.1} parent=1 // loop_exit
      _
    %1438 = vsyncpa [#allocation3], 1
    %s1439 = scalar_lea.sflag [#allocation3], 1
    %1440 = vsyncpa %s1439, 1
    %1441 = vsyncpa [#allocation6], 1
    %s1442 = scalar_lea.sflag [#allocation6], 1
    %1443 = vsyncpa %s1442, 1
    %1444 = vsyncpa [#allocation9], 1
    %1445 = vsyncpa [#allocation4], 1
    %s1446 = scalar_lea.sflag [#allocation4], 1
    %1447 = vsyncpa %s1446, 1

</llo_original>
